<compile_context>
chip_gen: v5e
topology: v5e:2x2
jax: 0.10.0
libtpu: 0.0.40
codegen_flags: <defaults>
</compile_context>

<pallas_src>
import jax
import jax.numpy as jnp
from jax.experimental import pallas as pl
from jax.experimental.pallas import tpu as pltpu

# Logical / padded (lane-aligned) dims.
K = 1000
K_PAD = 1024      # 1000 -> 1024
H1 = 512          # already a multiple of 128
H2 = 64
H2_PAD = 128      # 64   -> 128
OUT = 2
OUT_PAD = 128     # 2    -> 128
TB_MAX = 512      # max batch tile (x tile 1 MiB bf16 + out tile 256 KiB)


def _round_up(n, m):
    return ((n + m - 1) // m) * m


def _mlp_kernel(x_ref, w1_ref, b1_ref, w2_ref, b2_ref, w3_ref, b3_ref, o_ref):
    # x_ref: (TB, 1024) bf16; weights bf16; biases f32; output (TB, 128) f32.
    x = x_ref[...]
    h1 = jnp.dot(x, w1_ref[...], preferred_element_type=jnp.float32) + b1_ref[...]
    h1 = jnp.maximum(h1, 0.0)                                         # (TB, 512) f32
    h2 = jnp.dot(h1.astype(jnp.bfloat16), w2_ref[...],
                 preferred_element_type=jnp.float32) + b2_ref[...]
    h2 = jnp.maximum(h2, 0.0)                                         # (TB, 128) f32
    out = jnp.dot(h2.astype(jnp.bfloat16), w3_ref[...],
                  preferred_element_type=jnp.float32) + b3_ref[...]
    o_ref[...] = out                                                  # (TB, 128) f32


def prepare_params(params):
    """One-time zero-pad + bf16 cast of the weights to the lane-aligned layout.

    Call once at setup; pass the result to nd_parameter_estimator_forward.
    Padding is exact: padded x columns hit zero w1 rows, padded hidden/output
    columns have zero weights and biases.
    """
    w1 = jnp.zeros((K_PAD, H1), jnp.float32).at[:K, :].set(params["w1"])
    b1 = params["b1"].reshape(1, H1).astype(jnp.float32)

    w2 = jnp.zeros((H1, H2_PAD), jnp.float32).at[:, :H2].set(params["w2"])
    b2 = jnp.zeros((1, H2_PAD), jnp.float32).at[:, :H2].set(
        params["b2"].reshape(1, H2))

    w3 = jnp.zeros((H2_PAD, OUT_PAD), jnp.float32).at[:H2, :OUT].set(params["w3"])
    b3 = jnp.zeros((1, OUT_PAD), jnp.float32).at[:, :OUT].set(
        params["b3"].reshape(1, OUT))

    return (w1.astype(jnp.bfloat16), b1,
            w2.astype(jnp.bfloat16), b2,
            w3.astype(jnp.bfloat16), b3)


def _tile_plan(B):
    """Pick (TB, num_grid_steps): TB multiple of 16, <= 512, >= 2 steps if B > 16."""
    if B <= 16:
        return 16, 1
    n_steps = max(2, -(-B // TB_MAX))          # enough steps so TB <= 512, min 2
    tb = _round_up(-(-B // n_steps), 16)       # ceil(B / n_steps), rounded to 16
    return tb, n_steps


@jax.jit
def nd_parameter_estimator_forward(points, padded_params):
    """Forward pass of NDParameterEstimator.

    points:        (batch, 1000) float32
    padded_params: output of prepare_params(params)
    returns:       (batch, 2) float32
    """
    w1, b1, w2, b2, w3, b3 = padded_params
    B = points.shape[0]
    TB, n_steps = _tile_plan(B)
    B_full = TB * n_steps

    # torch.sort(points): ascending sort along the last dim (values only).
    points_sorted = jnp.sort(points, axis=-1)

    # Pad rows to B_full and K to 1024 directly on the bf16 tensor (zeros).
    x = jnp.pad(points_sorted.astype(jnp.bfloat16),
                ((0, B_full - B), (0, K_PAD - K)))

    # VMEM budget: resident weights (+ possible double buffer) + 2x x/out tiles.
    weight_bytes = (K_PAD * H1 + H1 * H2_PAD + H2_PAD * OUT_PAD) * 2
    bias_bytes = (H1 + H2_PAD + OUT_PAD) * 4
    tile_bytes = TB * K_PAD * 2 + TB * OUT_PAD * 4
    vmem_bytes = 2 * (weight_bytes + bias_bytes) + 2 * tile_bytes + (4 << 20)
    vmem_bytes = max(vmem_bytes, 12 << 20)

    cost = pl.CostEstimate(
        flops=2 * B_full * (K_PAD * H1 + H1 * H2_PAD + H2_PAD * OUT_PAD),
        transcendentals=0,
        bytes_accessed=(weight_bytes + bias_bytes
                        + B_full * K_PAD * 2 + B_full * OUT_PAD * 4),
    )

    const2d = lambda i: (0, 0)   # weights/biases: same block every step (resident)

    out_padded = pl.pallas_call(
        _mlp_kernel,
        out_shape=jax.ShapeDtypeStruct((B_full, OUT_PAD), jnp.float32),
        grid=(n_steps,),
        in_specs=[
            pl.BlockSpec((TB, K_PAD), lambda i: (i, 0)),       # x tile
            pl.BlockSpec((K_PAD, H1), const2d),                # w1
            pl.BlockSpec((1, H1), const2d),                    # b1
            pl.BlockSpec((H1, H2_PAD), const2d),               # w2
            pl.BlockSpec((1, H2_PAD), const2d),                # b2
            pl.BlockSpec((H2_PAD, OUT_PAD), const2d),          # w3
            pl.BlockSpec((1, OUT_PAD), const2d),               # b3
        ],
        out_specs=pl.BlockSpec((TB, OUT_PAD), lambda i: (i, 0)),
        compiler_params=pltpu.CompilerParams(
            dimension_semantics=("parallel",),
            vmem_limit_bytes=int(vmem_bytes),
        ),
        cost_estimate=cost,
    )(x, w1, b1, w2, b2, w3, b3)

    return out_padded[:B, :OUT]


def init_params(key):
    """Deterministic init mimicking torch.nn.Linear default (uniform +/-1/sqrt(fan_in))."""
    dims = [(K, H1), (H1, H2), (H2, OUT)]
    params = {}
    for i, (fan_in, fan_out) in enumerate(dims, start=1):
        key, kw, kb = jax.random.split(key, 3)
        bound = 1.0 / jnp.sqrt(float(fan_in))
        params[f"w{i}"] = jax.random.uniform(
            kw, (fan_in, fan_out), jnp.float32, minval=-bound, maxval=bound)
        params[f"b{i}"] = jax.random.uniform(
            kb, (1, fan_out), jnp.float32, minval=-bound, maxval=bound)
    return params


def _reference(points, params):
    """Plain-JAX reference with identical bf16-weight / f32-accumulate math."""
    xs = jnp.sort(points, axis=-1).astype(jnp.bfloat16)
    h1 = jnp.maximum(
        jnp.dot(xs, params["w1"].astype(jnp.bfloat16),
                preferred_element_type=jnp.float32) + params["b1"], 0.0)
    h2 = jnp.maximum(
        jnp.dot(h1.astype(jnp.bfloat16), params["w2"].astype(jnp.bfloat16),
                preferred_element_type=jnp.float32) + params["b2"], 0.0)
    return jnp.dot(h2.astype(jnp.bfloat16), params["w3"].astype(jnp.bfloat16),
                   preferred_element_type=jnp.float32) + params["b3"]


if __name__ == "__main__":
    key = jax.random.PRNGKey(0)
    key, kp1, kp2 = jax.random.split(key, 3)
    params = init_params(key)
    padded_params = prepare_params(params)   # pad/cast once, outside the hot path

    # Small batch (single grid step).
    points_small = jax.random.normal(kp1, (4, K), dtype=jnp.float32)
    pred_small = jax.block_until_ready(
        nd_parameter_estimator_forward(points_small, padded_params))
    assert pred_small.shape == (4, OUT), pred_small.shape
    assert pred_small.dtype == jnp.float32, pred_small.dtype
    ref_small = _reference(points_small, params)
    assert jnp.allclose(pred_small, ref_small, atol=2e-3, rtol=2e-2), (
        pred_small, ref_small)

    # Larger batch (multi-step grid: exercises batch tiling/padding path).
    points_big = jax.random.normal(kp2, (100, K), dtype=jnp.float32)
    pred_big = jax.block_until_ready(
        nd_parameter_estimator_forward(points_big, padded_params))
    assert pred_big.shape == (100, OUT), pred_big.shape
    ref_big = _reference(points_big, params)
    assert jnp.allclose(pred_big, ref_big, atol=2e-3, rtol=2e-2), (
        pred_big, ref_big)

    print("KERNEL_OK")
</pallas_src>

<mosaic_0001>
module attributes {stable_mosaic.version = 11 : i64} {
  func.func @_mlp_kernel(%arg0: i32, %arg1: memref<16x1024xbf16, #tpu.memory_space<vmem>>, %arg2: memref<1024x512xbf16, #tpu.memory_space<vmem>>, %arg3: memref<1x512xf32, #tpu.memory_space<vmem>>, %arg4: memref<512x128xbf16, #tpu.memory_space<vmem>>, %arg5: memref<1x128xf32, #tpu.memory_space<vmem>>, %arg6: memref<128x128xbf16, #tpu.memory_space<vmem>>, %arg7: memref<1x128xf32, #tpu.memory_space<vmem>>, %arg8: memref<16x128xf32, #tpu.memory_space<vmem>>) attributes {dimension_semantics = [#tpu.dimension_semantics<parallel>], iteration_bounds = array<i64: 1>, scalar_prefetch = 0 : i64, scratch_operands = 0 : i64, tpu.core_type = #tpu.core_type<tc>, window_params = [{transform_indices = @transform_0, window_bounds = array<i64: 16, 1024>}, {pipeline_mode = #tpu.pipeline_mode<synchronous>, transform_indices = @transform_1, window_bounds = array<i64: 1024, 512>}, {pipeline_mode = #tpu.pipeline_mode<synchronous>, transform_indices = @transform_2, window_bounds = array<i64: 1, 512>}, {pipeline_mode = #tpu.pipeline_mode<synchronous>, transform_indices = @transform_3, window_bounds = array<i64: 512, 128>}, {pipeline_mode = #tpu.pipeline_mode<synchronous>, transform_indices = @transform_4, window_bounds = array<i64: 1, 128>}, {pipeline_mode = #tpu.pipeline_mode<synchronous>, transform_indices = @transform_5, window_bounds = array<i64: 128, 128>}, {pipeline_mode = #tpu.pipeline_mode<synchronous>, transform_indices = @transform_6, window_bounds = array<i64: 1, 128>}, {transform_indices = @transform_7, window_bounds = array<i64: 16, 128>}]} {
    %c0 = arith.constant 0 : index
    %c0_0 = arith.constant 0 : index
    %0 = vector.load %arg1[%c0, %c0_0] : memref<16x1024xbf16, #tpu.memory_space<vmem>>, vector<16x1024xbf16>
    %c0_1 = arith.constant 0 : index
    %c0_2 = arith.constant 0 : index
    %1 = vector.load %arg2[%c0_1, %c0_2] : memref<1024x512xbf16, #tpu.memory_space<vmem>>, vector<1024x512xbf16>
    %cst = arith.constant dense<0.000000e+00> : vector<16x512xf32>
    %2 = tpu.matmul %0, %1, %cst {dimension_numbers = #tpu.dot_dimension_numbers<[1], [0], [0], [1], [0, 0, 1, 1], [], []>} : vector<16x1024xbf16>, vector<1024x512xbf16>, vector<16x512xf32> -> vector<16x512xf32>
    %c0_3 = arith.constant 0 : index
    %c0_4 = arith.constant 0 : index
    %3 = vector.load %arg3[%c0_3, %c0_4] : memref<1x512xf32, #tpu.memory_space<vmem>>, vector<1x512xf32>
    %4 = vector.broadcast %3 : vector<1x512xf32> to vector<16x512xf32>
    %5 = arith.addf %2, %4 : vector<16x512xf32>
    %cst_5 = arith.constant 0.000000e+00 : f32
    %6 = vector.broadcast %cst_5 : f32 to vector<16x512xf32>
    %7 = arith.maximumf %5, %6 : vector<16x512xf32>
    %8 = arith.truncf %7 : vector<16x512xf32> to vector<16x512xbf16>
    %c0_6 = arith.constant 0 : index
    %c0_7 = arith.constant 0 : index
    %9 = vector.load %arg4[%c0_6, %c0_7] : memref<512x128xbf16, #tpu.memory_space<vmem>>, vector<512x128xbf16>
    %cst_8 = arith.constant dense<0.000000e+00> : vector<16x128xf32>
    %10 = tpu.matmul %8, %9, %cst_8 {dimension_numbers = #tpu.dot_dimension_numbers<[1], [0], [0], [1], [0, 0, 1, 1], [], []>} : vector<16x512xbf16>, vector<512x128xbf16>, vector<16x128xf32> -> vector<16x128xf32>
    %c0_9 = arith.constant 0 : index
    %c0_10 = arith.constant 0 : index
    %11 = vector.load %arg5[%c0_9, %c0_10] : memref<1x128xf32, #tpu.memory_space<vmem>>, vector<1x128xf32>
    %12 = vector.broadcast %11 : vector<1x128xf32> to vector<16x128xf32>
    %13 = arith.addf %10, %12 : vector<16x128xf32>
    %cst_11 = arith.constant 0.000000e+00 : f32
    %14 = vector.broadcast %cst_11 : f32 to vector<16x128xf32>
    %15 = arith.maximumf %13, %14 : vector<16x128xf32>
    %16 = arith.truncf %15 : vector<16x128xf32> to vector<16x128xbf16>
    %c0_12 = arith.constant 0 : index
    %c0_13 = arith.constant 0 : index
    %17 = vector.load %arg6[%c0_12, %c0_13] : memref<128x128xbf16, #tpu.memory_space<vmem>>, vector<128x128xbf16>
    %cst_14 = arith.constant dense<0.000000e+00> : vector<16x128xf32>
    %18 = tpu.matmul %16, %17, %cst_14 {dimension_numbers = #tpu.dot_dimension_numbers<[1], [0], [0], [1], [0, 0, 1, 1], [], []>} : vector<16x128xbf16>, vector<128x128xbf16>, vector<16x128xf32> -> vector<16x128xf32>
    %c0_15 = arith.constant 0 : index
    %c0_16 = arith.constant 0 : index
    %19 = vector.load %arg7[%c0_15, %c0_16] : memref<1x128xf32, #tpu.memory_space<vmem>>, vector<1x128xf32>
    %20 = vector.broadcast %19 : vector<1x128xf32> to vector<16x128xf32>
    %21 = arith.addf %18, %20 : vector<16x128xf32>
    %c0_17 = arith.constant 0 : index
    %c0_18 = arith.constant 0 : index
    %22 = vector.load %arg8[%c0_17, %c0_18] : memref<16x128xf32, #tpu.memory_space<vmem>>, vector<16x128xf32>
    tpu.vector_store %arg8[%c0_17, %c0_18], %21 {strides = array<i32>} : memref<16x128xf32, #tpu.memory_space<vmem>>, vector<16x128xf32>,
    return
  }
  func.func @transform_0(%arg0: i32) -> (i32, i32) {
    %c0_i32 = arith.constant 0 : i32
    %c0_i32_0 = arith.constant 0 : i32
    return %arg0, %c0_i32 : i32, i32
  }
  func.func @transform_1(%arg0: i32) -> (i32, i32) {
    %c0_i32 = arith.constant 0 : i32
    %c0_i32_0 = arith.constant 0 : i32
    %c0_i32_1 = arith.constant 0 : i32
    return %c0_i32, %c0_i32_0 : i32, i32
  }
  func.func @transform_2(%arg0: i32) -> (i32, i32) {
    %c0_i32 = arith.constant 0 : i32
    %c0_i32_0 = arith.constant 0 : i32
    %c0_i32_1 = arith.constant 0 : i32
    return %c0_i32, %c0_i32_0 : i32, i32
  }
  func.func @transform_3(%arg0: i32) -> (i32, i32) {
    %c0_i32 = arith.constant 0 : i32
    %c0_i32_0 = arith.constant 0 : i32
    %c0_i32_1 = arith.constant 0 : i32
    return %c0_i32, %c0_i32_0 : i32, i32
  }
  func.func @transform_4(%arg0: i32) -> (i32, i32) {
    %c0_i32 = arith.constant 0 : i32
    %c0_i32_0 = arith.constant 0 : i32
    %c0_i32_1 = arith.constant 0 : i32
    return %c0_i32, %c0_i32_0 : i32, i32
  }
  func.func @transform_5(%arg0: i32) -> (i32, i32) {
    %c0_i32 = arith.constant 0 : i32
    %c0_i32_0 = arith.constant 0 : i32
    %c0_i32_1 = arith.constant 0 : i32
    return %c0_i32, %c0_i32_0 : i32, i32
  }
  func.func @transform_6(%arg0: i32) -> (i32, i32) {
    %c0_i32 = arith.constant 0 : i32
    %c0_i32_0 = arith.constant 0 : i32
    %c0_i32_1 = arith.constant 0 : i32
    return %c0_i32, %c0_i32_0 : i32, i32
  }
  func.func @transform_7(%arg0: i32) -> (i32, i32) {
    %c0_i32 = arith.constant 0 : i32
    %c0_i32_0 = arith.constant 0 : i32
    return %arg0, %c0_i32 : i32, i32
  }
}

</mosaic_0001>

<llo_original>
// kernel: nd_parameter_estimator_forward.1
$region0: #{nd_parameter_estimator_forward.1}
  #allocation0 [shape = 'u32[]', space=smem, size = 0x4, offset = 0x4, fixed_abs, tag = 'smem constant byte address 0x4 - core index']
  #allocation1 [shape = 'u32[72,128]{1,0:T(1,128)}', space=vmem, size = 0x9000, scoped, tag = 'internal scratch']
  %s0 = inlined_call_operand.vmem [shape: bf16[16,1024], index: 0, kind: input, shape index: {}]
  %s1 = inlined_call_operand.hbm [shape: bf16[1024,512], index: 1, kind: input, shape index: {}]
  %s2 = inlined_call_operand.vmem [shape: f32[1,512], index: 2, kind: input, shape index: {}]
  %s3 = inlined_call_operand.vmem [shape: bf16[512,128], index: 3, kind: input, shape index: {}]
  %s4 = inlined_call_operand.vmem [shape: f32[1,128], index: 4, kind: input, shape index: {}]
  %s5 = inlined_call_operand.hbm [shape: bf16[128,128], index: 5, kind: input, shape index: {}]
  %s6 = inlined_call_operand.vmem [shape: f32[1,128], index: 6, kind: input, shape index: {}]
  %s7 = inlined_call_operand.vmem [shape: f32[16,128], index: 7, kind: output, shape index: {}]
  %s8 = sld [smem:[#allocation0]]
  $region46: #{nd_parameter_estimator_forward.1} parent=0
    _
  %s10 = ssub.s32 1, %s8
  %s11 = scalar_select 0, %s10, %s8
  $region1: #{nd_parameter_estimator_forward.1} parent=0
    #allocation2 [shape = 'u8[1048576]{0}', space=vmem, size = 0x100000, scoped, tag = 'input window, operand 1, single buffered']
    #allocation3 [shape = 's32[1]{0}', space=sflag, size = 0x4, scoped, tag = 'scoped memory for nd_parameter_estimator_forward.1']
    #allocation4 [shape = 'u8[32768]{0}', space=vmem, size = 0x8000, scoped, tag = 'input window, operand 5, single buffered']
    #allocation5 [shape = 's32[1]{0}', space=sflag, size = 0x4, scoped, tag = 'scoped memory for nd_parameter_estimator_forward.1']
    %12 = vsyncpa [#allocation3], 0
    %13 = vsyncpa [#allocation5], 0
    // Predicated region
    $region2: #{nd_parameter_estimator_forward.1} parent=1 // pred_check
      _
    $region3: #{nd_parameter_estimator_forward.1} parent=1 // pred_check_branch
      %15 = sbr.rel (0) target = $region5
    $region4: #{nd_parameter_estimator_forward.1} parent=1 // pred_region
      _
    $region5: #{nd_parameter_estimator_forward.1} parent=1 // pred_fallthru
      _
    // Predicated region
    $region6: #{nd_parameter_estimator_forward.1} parent=1 // pred_check
      _
    $region7: #{nd_parameter_estimator_forward.1} parent=1 // pred_check_branch
      %17 = sbr.rel (0) target = $region9
    $region8: #{nd_parameter_estimator_forward.1} parent=1 // pred_region
      %19 = vsyncadd [#allocation3], 0
      %s20 = sshll.u32 %s1, 4
      %s21 = int_to_ptr.hbm [resolvable:$true] %s20
      %s22 = sshll.u32 [#allocation2], 4
      %s23 = int_to_ptr.vmem [resolvable:$true] %s22
      %28 = dma.hbm_to_vmem [thread:$0]  %s21, 32768, %s23, [#allocation3], 256, 256, 16
    $region9: #{nd_parameter_estimator_forward.1} parent=1 // pred_fallthru
      _
    // Predicated region
    $region10: #{nd_parameter_estimator_forward.1} parent=1 // pred_check
      _
    $region11: #{nd_parameter_estimator_forward.1} parent=1 // pred_check_branch
      %30 = sbr.rel (0) target = $region13
    $region12: #{nd_parameter_estimator_forward.1} parent=1 // pred_region
      _
    $region13: #{nd_parameter_estimator_forward.1} parent=1 // pred_fallthru
      _
    // Predicated region
    $region14: #{nd_parameter_estimator_forward.1} parent=1 // pred_check
      _
    $region15: #{nd_parameter_estimator_forward.1} parent=1 // pred_check_branch
      %32 = sbr.rel (0) target = $region17
    $region16: #{nd_parameter_estimator_forward.1} parent=1 // pred_region
      _
    $region17: #{nd_parameter_estimator_forward.1} parent=1 // pred_fallthru
      _
    // Predicated region
    $region18: #{nd_parameter_estimator_forward.1} parent=1 // pred_check
      _
    $region19: #{nd_parameter_estimator_forward.1} parent=1 // pred_check_branch
      %34 = sbr.rel (0) target = $region21
    $region20: #{nd_parameter_estimator_forward.1} parent=1 // pred_region
      _
    $region21: #{nd_parameter_estimator_forward.1} parent=1 // pred_fallthru
      _
    // Predicated region
    $region22: #{nd_parameter_estimator_forward.1} parent=1 // pred_check
      _
    $region23: #{nd_parameter_estimator_forward.1} parent=1 // pred_check_branch
      %36 = sbr.rel (0) target = $region25
    $region24: #{nd_parameter_estimator_forward.1} parent=1 // pred_region
      %38 = vsyncadd [#allocation5], 0
      %s39 = sshll.u32 %s5, 4
      %s40 = int_to_ptr.hbm [resolvable:$true] %s39
      %s41 = sshll.u32 [#allocation4], 4
      %s42 = int_to_ptr.vmem [resolvable:$true] %s41
      %47 = dma.hbm_to_vmem [thread:$0]  %s40, 1024, %s42, [#allocation5], 64, 64, 4
    $region25: #{nd_parameter_estimator_forward.1} parent=1 // pred_fallthru
      _
    // Predicated region
    $region26: #{nd_parameter_estimator_forward.1} parent=1 // pred_check
      _
    $region27: #{nd_parameter_estimator_forward.1} parent=1 // pred_check_branch
      %49 = sbr.rel (0) target = $region29
    $region28: #{nd_parameter_estimator_forward.1} parent=1 // pred_region
      _
    $region29: #{nd_parameter_estimator_forward.1} parent=1 // pred_fallthru
      _
    // Predicated region
    $region30: #{nd_parameter_estimator_forward.1} parent=1 // pred_check
      _
    $region31: #{nd_parameter_estimator_forward.1} parent=1 // pred_check_branch
      %51 = sbr.rel (0) target = $region33
    $region32: #{nd_parameter_estimator_forward.1} parent=1 // pred_region
      %53 = dma.done [#allocation3], 32768
    $region33: #{nd_parameter_estimator_forward.1} parent=1 // pred_fallthru
      _
    // Predicated region
    $region34: #{nd_parameter_estimator_forward.1} parent=1 // pred_check
      _
    $region35: #{nd_parameter_estimator_forward.1} parent=1 // pred_check_branch
      %55 = sbr.rel (0) target = $region37
    $region36: #{nd_parameter_estimator_forward.1} parent=1 // pred_region
      %57 = dma.done [#allocation5], 1024
    $region37: #{nd_parameter_estimator_forward.1} parent=1 // pred_fallthru
      _
    %v58 = vld [vmem:[%s0] sm:$0xff]
    %v59 = vld [vmem:[%s0 + $0x8] sm:$0xff]
    %v60 = vld [vmem:[%s0 + $0x10] sm:$0xff]
    %v61 = vld [vmem:[%s0 + $0x18] sm:$0xff]
    %v62 = vld [vmem:[%s0 + $0x20] sm:$0xff]
    %v63 = vld [vmem:[%s0 + $0x28] sm:$0xff]
    %v64 = vld [vmem:[%s0 + $0x30] sm:$0xff]
    %v65 = vld [vmem:[%s0 + $0x38] sm:$0xff]
    %v66 = vld [vmem:[#allocation2] sm:$0xff]
    %v67 = vld [vmem:[#allocation2 + $0x8] sm:$0xff]
    %v68 = vld [vmem:[#allocation2 + $0x10] sm:$0xff]
    %v69 = vld [vmem:[#allocation2 + $0x18] sm:$0xff]
    %v70 = vld [vmem:[#allocation2 + $0x20] sm:$0xff]
    %v71 = vld [vmem:[#allocation2 + $0x28] sm:$0xff]
    %v72 = vld [vmem:[#allocation2 + $0x30] sm:$0xff]
    %v73 = vld [vmem:[#allocation2 + $0x38] sm:$0xff]
    %v74 = vld [vmem:[#allocation2 + $0x40] sm:$0xff]
    %v75 = vld [vmem:[#allocation2 + $0x48] sm:$0xff]
    %v76 = vld [vmem:[#allocation2 + $0x50] sm:$0xff]
    %v77 = vld [vmem:[#allocation2 + $0x58] sm:$0xff]
    %v78 = vld [vmem:[#allocation2 + $0x60] sm:$0xff]
    %v79 = vld [vmem:[#allocation2 + $0x68] sm:$0xff]
    %v80 = vld [vmem:[#allocation2 + $0x70] sm:$0xff]
    %v81 = vld [vmem:[#allocation2 + $0x78] sm:$0xff]
    %v82 = vld [vmem:[#allocation2 + $0x80] sm:$0xff]
    %v83 = vld [vmem:[#allocation2 + $0x88] sm:$0xff]
    %v84 = vld [vmem:[#allocation2 + $0x90] sm:$0xff]
    %v85 = vld [vmem:[#allocation2 + $0x98] sm:$0xff]
    %v86 = vld [vmem:[#allocation2 + $0xa0] sm:$0xff]
    %v87 = vld [vmem:[#allocation2 + $0xa8] sm:$0xff]
    %v88 = vld [vmem:[#allocation2 + $0xb0] sm:$0xff]
    %v89 = vld [vmem:[#allocation2 + $0xb8] sm:$0xff]
    %v90 = vld [vmem:[#allocation2 + $0xc0] sm:$0xff]
    %v91 = vld [vmem:[#allocation2 + $0xc8] sm:$0xff]
    %v92 = vld [vmem:[#allocation2 + $0xd0] sm:$0xff]
    %v93 = vld [vmem:[#allocation2 + $0xd8] sm:$0xff]
    %v94 = vld [vmem:[#allocation2 + $0xe0] sm:$0xff]
    %v95 = vld [vmem:[#allocation2 + $0xe8] sm:$0xff]
    %v96 = vld [vmem:[#allocation2 + $0xf0] sm:$0xff]
    %v97 = vld [vmem:[#allocation2 + $0xf8] sm:$0xff]
    %v98 = vld [vmem:[#allocation2 + $0x100] sm:$0xff]
    %v99 = vld [vmem:[#allocation2 + $0x108] sm:$0xff]
    %v100 = vld [vmem:[#allocation2 + $0x110] sm:$0xff]
    %v101 = vld [vmem:[#allocation2 + $0x118] sm:$0xff]
    %v102 = vld [vmem:[#allocation2 + $0x120] sm:$0xff]
    %v103 = vld [vmem:[#allocation2 + $0x128] sm:$0xff]
    %v104 = vld [vmem:[#allocation2 + $0x130] sm:$0xff]
    %v105 = vld [vmem:[#allocation2 + $0x138] sm:$0xff]
    %v106 = vld [vmem:[#allocation2 + $0x140] sm:$0xff]
    %v107 = vld [vmem:[#allocation2 + $0x148] sm:$0xff]
    %v108 = vld [vmem:[#allocation2 + $0x150] sm:$0xff]
    %v109 = vld [vmem:[#allocation2 + $0x158] sm:$0xff]
    %v110 = vld [vmem:[#allocation2 + $0x160] sm:$0xff]
    %v111 = vld [vmem:[#allocation2 + $0x168] sm:$0xff]
    %v112 = vld [vmem:[#allocation2 + $0x170] sm:$0xff]
    %v113 = vld [vmem:[#allocation2 + $0x178] sm:$0xff]
    %v114 = vld [vmem:[#allocation2 + $0x180] sm:$0xff]
    %v115 = vld [vmem:[#allocation2 + $0x188] sm:$0xff]
    %v116 = vld [vmem:[#allocation2 + $0x190] sm:$0xff]
    %v117 = vld [vmem:[#allocation2 + $0x198] sm:$0xff]
    %v118 = vld [vmem:[#allocation2 + $0x1a0] sm:$0xff]
    %v119 = vld [vmem:[#allocation2 + $0x1a8] sm:$0xff]
    %v120 = vld [vmem:[#allocation2 + $0x1b0] sm:$0xff]
    %v121 = vld [vmem:[#allocation2 + $0x1b8] sm:$0xff]
    %v122 = vld [vmem:[#allocation2 + $0x1c0] sm:$0xff]
    %v123 = vld [vmem:[#allocation2 + $0x1c8] sm:$0xff]
    %v124 = vld [vmem:[#allocation2 + $0x1d0] sm:$0xff]
    %v125 = vld [vmem:[#allocation2 + $0x1d8] sm:$0xff]
    %v126 = vld [vmem:[#allocation2 + $0x1e0] sm:$0xff]
    %v127 = vld [vmem:[#allocation2 + $0x1e8] sm:$0xff]
    %v128 = vld [vmem:[#allocation2 + $0x1f0] sm:$0xff]
    %v129 = vld [vmem:[#allocation2 + $0x1f8] sm:$0xff]
    %v130 = vld [vmem:[#allocation2 + $0x200] sm:$0xff]
    %v131 = vld [vmem:[#allocation2 + $0x208] sm:$0xff]
    %v132 = vld [vmem:[#allocation2 + $0x210] sm:$0xff]
    %v133 = vld [vmem:[#allocation2 + $0x218] sm:$0xff]
    %v134 = vld [vmem:[#allocation2 + $0x220] sm:$0xff]
    %v135 = vld [vmem:[#allocation2 + $0x228] sm:$0xff]
    %v136 = vld [vmem:[#allocation2 + $0x230] sm:$0xff]
    %v137 = vld [vmem:[#allocation2 + $0x238] sm:$0xff]
    %v138 = vld [vmem:[#allocation2 + $0x240] sm:$0xff]
    %v139 = vld [vmem:[#allocation2 + $0x248] sm:$0xff]
    %v140 = vld [vmem:[#allocation2 + $0x250] sm:$0xff]
    %v141 = vld [vmem:[#allocation2 + $0x258] sm:$0xff]
    %v142 = vld [vmem:[#allocation2 + $0x260] sm:$0xff]
    %v143 = vld [vmem:[#allocation2 + $0x268] sm:$0xff]
    %v144 = vld [vmem:[#allocation2 + $0x270] sm:$0xff]
    %v145 = vld [vmem:[#allocation2 + $0x278] sm:$0xff]
    %v146 = vld [vmem:[#allocation2 + $0x280] sm:$0xff]
    %v147 = vld [vmem:[#allocation2 + $0x288] sm:$0xff]
    %v148 = vld [vmem:[#allocation2 + $0x290] sm:$0xff]
    %v149 = vld [vmem:[#allocation2 + $0x298] sm:$0xff]
    %v150 = vld [vmem:[#allocation2 + $0x2a0] sm:$0xff]
    %v151 = vld [vmem:[#allocation2 + $0x2a8] sm:$0xff]
    %v152 = vld [vmem:[#allocation2 + $0x2b0] sm:$0xff]
    %v153 = vld [vmem:[#allocation2 + $0x2b8] sm:$0xff]
    %v154 = vld [vmem:[#allocation2 + $0x2c0] sm:$0xff]
    %v155 = vld [vmem:[#allocation2 + $0x2c8] sm:$0xff]
    %v156 = vld [vmem:[#allocation2 + $0x2d0] sm:$0xff]
    %v157 = vld [vmem:[#allocation2 + $0x2d8] sm:$0xff]
    %v158 = vld [vmem:[#allocation2 + $0x2e0] sm:$0xff]
    %v159 = vld [vmem:[#allocation2 + $0x2e8] sm:$0xff]
    %v160 = vld [vmem:[#allocation2 + $0x2f0] sm:$0xff]
    %v161 = vld [vmem:[#allocation2 + $0x2f8] sm:$0xff]
    %v162 = vld [vmem:[#allocation2 + $0x300] sm:$0xff]
    %v163 = vld [vmem:[#allocation2 + $0x308] sm:$0xff]
    %v164 = vld [vmem:[#allocation2 + $0x310] sm:$0xff]
    %v165 = vld [vmem:[#allocation2 + $0x318] sm:$0xff]
    %v166 = vld [vmem:[#allocation2 + $0x320] sm:$0xff]
    %v167 = vld [vmem:[#allocation2 + $0x328] sm:$0xff]
    %v168 = vld [vmem:[#allocation2 + $0x330] sm:$0xff]
    %v169 = vld [vmem:[#allocation2 + $0x338] sm:$0xff]
    %v170 = vld [vmem:[#allocation2 + $0x340] sm:$0xff]
    %v171 = vld [vmem:[#allocation2 + $0x348] sm:$0xff]
    %v172 = vld [vmem:[#allocation2 + $0x350] sm:$0xff]
    %v173 = vld [vmem:[#allocation2 + $0x358] sm:$0xff]
    %v174 = vld [vmem:[#allocation2 + $0x360] sm:$0xff]
    %v175 = vld [vmem:[#allocation2 + $0x368] sm:$0xff]
    %v176 = vld [vmem:[#allocation2 + $0x370] sm:$0xff]
    %v177 = vld [vmem:[#allocation2 + $0x378] sm:$0xff]
    %v178 = vld [vmem:[#allocation2 + $0x380] sm:$0xff]
    %v179 = vld [vmem:[#allocation2 + $0x388] sm:$0xff]
    %v180 = vld [vmem:[#allocation2 + $0x390] sm:$0xff]
    %v181 = vld [vmem:[#allocation2 + $0x398] sm:$0xff]
    %v182 = vld [vmem:[#allocation2 + $0x3a0] sm:$0xff]
    %v183 = vld [vmem:[#allocation2 + $0x3a8] sm:$0xff]
    %v184 = vld [vmem:[#allocation2 + $0x3b0] sm:$0xff]
    %v185 = vld [vmem:[#allocation2 + $0x3b8] sm:$0xff]
    %v186 = vld [vmem:[#allocation2 + $0x3c0] sm:$0xff]
    %v187 = vld [vmem:[#allocation2 + $0x3c8] sm:$0xff]
    %v188 = vld [vmem:[#allocation2 + $0x3d0] sm:$0xff]
    %v189 = vld [vmem:[#allocation2 + $0x3d8] sm:$0xff]
    %v190 = vld [vmem:[#allocation2 + $0x3e0] sm:$0xff]
    %v191 = vld [vmem:[#allocation2 + $0x3e8] sm:$0xff]
    %v192 = vld [vmem:[#allocation2 + $0x3f0] sm:$0xff]
    %v193 = vld [vmem:[#allocation2 + $0x3f8] sm:$0xff]
    %v194 = vld [vmem:[#allocation2 + $0x400] sm:$0xff]
    %v195 = vld [vmem:[#allocation2 + $0x408] sm:$0xff]
    %v196 = vld [vmem:[#allocation2 + $0x410] sm:$0xff]
    %v197 = vld [vmem:[#allocation2 + $0x418] sm:$0xff]
    %v198 = vld [vmem:[#allocation2 + $0x420] sm:$0xff]
    %v199 = vld [vmem:[#allocation2 + $0x428] sm:$0xff]
    %v200 = vld [vmem:[#allocation2 + $0x430] sm:$0xff]
    %v201 = vld [vmem:[#allocation2 + $0x438] sm:$0xff]
    %v202 = vld [vmem:[#allocation2 + $0x440] sm:$0xff]
    %v203 = vld [vmem:[#allocation2 + $0x448] sm:$0xff]
    %v204 = vld [vmem:[#allocation2 + $0x450] sm:$0xff]
    %v205 = vld [vmem:[#allocation2 + $0x458] sm:$0xff]
    %v206 = vld [vmem:[#allocation2 + $0x460] sm:$0xff]
    %v207 = vld [vmem:[#allocation2 + $0x468] sm:$0xff]
    %v208 = vld [vmem:[#allocation2 + $0x470] sm:$0xff]
    %v209 = vld [vmem:[#allocation2 + $0x478] sm:$0xff]
    %v210 = vld [vmem:[#allocation2 + $0x480] sm:$0xff]
    %v211 = vld [vmem:[#allocation2 + $0x488] sm:$0xff]
    %v212 = vld [vmem:[#allocation2 + $0x490] sm:$0xff]
    %v213 = vld [vmem:[#allocation2 + $0x498] sm:$0xff]
    %v214 = vld [vmem:[#allocation2 + $0x4a0] sm:$0xff]
    %v215 = vld [vmem:[#allocation2 + $0x4a8] sm:$0xff]
    %v216 = vld [vmem:[#allocation2 + $0x4b0] sm:$0xff]
    %v217 = vld [vmem:[#allocation2 + $0x4b8] sm:$0xff]
    %v218 = vld [vmem:[#allocation2 + $0x4c0] sm:$0xff]
    %v219 = vld [vmem:[#allocation2 + $0x4c8] sm:$0xff]
    %v220 = vld [vmem:[#allocation2 + $0x4d0] sm:$0xff]
    %v221 = vld [vmem:[#allocation2 + $0x4d8] sm:$0xff]
    %v222 = vld [vmem:[#allocation2 + $0x4e0] sm:$0xff]
    %v223 = vld [vmem:[#allocation2 + $0x4e8] sm:$0xff]
    %v224 = vld [vmem:[#allocation2 + $0x4f0] sm:$0xff]
    %v225 = vld [vmem:[#allocation2 + $0x4f8] sm:$0xff]
    %v226 = vld [vmem:[#allocation2 + $0x500] sm:$0xff]
    %v227 = vld [vmem:[#allocation2 + $0x508] sm:$0xff]
    %v228 = vld [vmem:[#allocation2 + $0x510] sm:$0xff]
    %v229 = vld [vmem:[#allocation2 + $0x518] sm:$0xff]
    %v230 = vld [vmem:[#allocation2 + $0x520] sm:$0xff]
    %v231 = vld [vmem:[#allocation2 + $0x528] sm:$0xff]
    %v232 = vld [vmem:[#allocation2 + $0x530] sm:$0xff]
    %v233 = vld [vmem:[#allocation2 + $0x538] sm:$0xff]
    %v234 = vld [vmem:[#allocation2 + $0x540] sm:$0xff]
    %v235 = vld [vmem:[#allocation2 + $0x548] sm:$0xff]
    %v236 = vld [vmem:[#allocation2 + $0x550] sm:$0xff]
    %v237 = vld [vmem:[#allocation2 + $0x558] sm:$0xff]
    %v238 = vld [vmem:[#allocation2 + $0x560] sm:$0xff]
    %v239 = vld [vmem:[#allocation2 + $0x568] sm:$0xff]
    %v240 = vld [vmem:[#allocation2 + $0x570] sm:$0xff]
    %v241 = vld [vmem:[#allocation2 + $0x578] sm:$0xff]
    %v242 = vld [vmem:[#allocation2 + $0x580] sm:$0xff]
    %v243 = vld [vmem:[#allocation2 + $0x588] sm:$0xff]
    %v244 = vld [vmem:[#allocation2 + $0x590] sm:$0xff]
    %v245 = vld [vmem:[#allocation2 + $0x598] sm:$0xff]
    %v246 = vld [vmem:[#allocation2 + $0x5a0] sm:$0xff]
    %v247 = vld [vmem:[#allocation2 + $0x5a8] sm:$0xff]
    %v248 = vld [vmem:[#allocation2 + $0x5b0] sm:$0xff]
    %v249 = vld [vmem:[#allocation2 + $0x5b8] sm:$0xff]
    %v250 = vld [vmem:[#allocation2 + $0x5c0] sm:$0xff]
    %v251 = vld [vmem:[#allocation2 + $0x5c8] sm:$0xff]
    %v252 = vld [vmem:[#allocation2 + $0x5d0] sm:$0xff]
    %v253 = vld [vmem:[#allocation2 + $0x5d8] sm:$0xff]
    %v254 = vld [vmem:[#allocation2 + $0x5e0] sm:$0xff]
    %v255 = vld [vmem:[#allocation2 + $0x5e8] sm:$0xff]
    %v256 = vld [vmem:[#allocation2 + $0x5f0] sm:$0xff]
    %v257 = vld [vmem:[#allocation2 + $0x5f8] sm:$0xff]
    %v258 = vld [vmem:[#allocation2 + $0x600] sm:$0xff]
    %v259 = vld [vmem:[#allocation2 + $0x608] sm:$0xff]
    %v260 = vld [vmem:[#allocation2 + $0x610] sm:$0xff]
    %v261 = vld [vmem:[#allocation2 + $0x618] sm:$0xff]
    %v262 = vld [vmem:[#allocation2 + $0x620] sm:$0xff]
    %v263 = vld [vmem:[#allocation2 + $0x628] sm:$0xff]
    %v264 = vld [vmem:[#allocation2 + $0x630] sm:$0xff]
    %v265 = vld [vmem:[#allocation2 + $0x638] sm:$0xff]
    %v266 = vld [vmem:[#allocation2 + $0x640] sm:$0xff]
    %v267 = vld [vmem:[#allocation2 + $0x648] sm:$0xff]
    %v268 = vld [vmem:[#allocation2 + $0x650] sm:$0xff]
    %v269 = vld [vmem:[#allocation2 + $0x658] sm:$0xff]
    %v270 = vld [vmem:[#allocation2 + $0x660] sm:$0xff]
    %v271 = vld [vmem:[#allocation2 + $0x668] sm:$0xff]
    %v272 = vld [vmem:[#allocation2 + $0x670] sm:$0xff]
    %v273 = vld [vmem:[#allocation2 + $0x678] sm:$0xff]
    %v274 = vld [vmem:[#allocation2 + $0x680] sm:$0xff]
    %v275 = vld [vmem:[#allocation2 + $0x688] sm:$0xff]
    %v276 = vld [vmem:[#allocation2 + $0x690] sm:$0xff]
    %v277 = vld [vmem:[#allocation2 + $0x698] sm:$0xff]
    %v278 = vld [vmem:[#allocation2 + $0x6a0] sm:$0xff]
    %v279 = vld [vmem:[#allocation2 + $0x6a8] sm:$0xff]
    %v280 = vld [vmem:[#allocation2 + $0x6b0] sm:$0xff]
    %v281 = vld [vmem:[#allocation2 + $0x6b8] sm:$0xff]
    %v282 = vld [vmem:[#allocation2 + $0x6c0] sm:$0xff]
    %v283 = vld [vmem:[#allocation2 + $0x6c8] sm:$0xff]
    %v284 = vld [vmem:[#allocation2 + $0x6d0] sm:$0xff]
    %v285 = vld [vmem:[#allocation2 + $0x6d8] sm:$0xff]
    %v286 = vld [vmem:[#allocation2 + $0x6e0] sm:$0xff]
    %v287 = vld [vmem:[#allocation2 + $0x6e8] sm:$0xff]
    %v288 = vld [vmem:[#allocation2 + $0x6f0] sm:$0xff]
    %v289 = vld [vmem:[#allocation2 + $0x6f8] sm:$0xff]
    %v290 = vld [vmem:[#allocation2 + $0x700] sm:$0xff]
    %v291 = vld [vmem:[#allocation2 + $0x708] sm:$0xff]
    %v292 = vld [vmem:[#allocation2 + $0x710] sm:$0xff]
    %v293 = vld [vmem:[#allocation2 + $0x718] sm:$0xff]
    %v294 = vld [vmem:[#allocation2 + $0x720] sm:$0xff]
    %v295 = vld [vmem:[#allocation2 + $0x728] sm:$0xff]
    %v296 = vld [vmem:[#allocation2 + $0x730] sm:$0xff]
    %v297 = vld [vmem:[#allocation2 + $0x738] sm:$0xff]
    %v298 = vld [vmem:[#allocation2 + $0x740] sm:$0xff]
    %v299 = vld [vmem:[#allocation2 + $0x748] sm:$0xff]
    %v300 = vld [vmem:[#allocation2 + $0x750] sm:$0xff]
    %v301 = vld [vmem:[#allocation2 + $0x758] sm:$0xff]
    %v302 = vld [vmem:[#allocation2 + $0x760] sm:$0xff]
    %v303 = vld [vmem:[#allocation2 + $0x768] sm:$0xff]
    %v304 = vld [vmem:[#allocation2 + $0x770] sm:$0xff]
    %v305 = vld [vmem:[#allocation2 + $0x778] sm:$0xff]
    %v306 = vld [vmem:[#allocation2 + $0x780] sm:$0xff]
    %v307 = vld [vmem:[#allocation2 + $0x788] sm:$0xff]
    %v308 = vld [vmem:[#allocation2 + $0x790] sm:$0xff]
    %v309 = vld [vmem:[#allocation2 + $0x798] sm:$0xff]
    %v310 = vld [vmem:[#allocation2 + $0x7a0] sm:$0xff]
    %v311 = vld [vmem:[#allocation2 + $0x7a8] sm:$0xff]
    %v312 = vld [vmem:[#allocation2 + $0x7b0] sm:$0xff]
    %v313 = vld [vmem:[#allocation2 + $0x7b8] sm:$0xff]
    %v314 = vld [vmem:[#allocation2 + $0x7c0] sm:$0xff]
    %v315 = vld [vmem:[#allocation2 + $0x7c8] sm:$0xff]
    %v316 = vld [vmem:[#allocation2 + $0x7d0] sm:$0xff]
    %v317 = vld [vmem:[#allocation2 + $0x7d8] sm:$0xff]
    %v318 = vld [vmem:[#allocation2 + $0x7e0] sm:$0xff]
    %v319 = vld [vmem:[#allocation2 + $0x7e8] sm:$0xff]
    %v320 = vld [vmem:[#allocation2 + $0x7f0] sm:$0xff]
    %v321 = vld [vmem:[#allocation2 + $0x7f8] sm:$0xff]
    %v322 = vld [vmem:[%s2] sm:$0xf]
    %v324 = vperm.slane %v322, 0
    %v325 = vperm.slane %v322, 1
    %v326 = vperm.slane %v322, 2
    %v327 = vperm.slane %v322, 3
    %v340 = vunpack.c.l.b16 %v58
    %v341 = vunpack.c.h.b16 %v58
    %v342 = vunpack.c.l.b16 %v59
    %v343 = vunpack.c.h.b16 %v59
    %v344 = vunpack.c.l.b16 %v60
    %v345 = vunpack.c.h.b16 %v60
    %v346 = vunpack.c.l.b16 %v61
    %v347 = vunpack.c.h.b16 %v61
    %v348 = vunpack.c.l.b16 %v62
    %v349 = vunpack.c.h.b16 %v62
    %v350 = vunpack.c.l.b16 %v63
    %v351 = vunpack.c.h.b16 %v63
    %v352 = vunpack.c.l.b16 %v64
    %v353 = vunpack.c.h.b16 %v64
    %v354 = vunpack.c.l.b16 %v65
    %v355 = vunpack.c.h.b16 %v65
    %v356 = vpack.c.b16 %v348, %v340
    %v357 = vpack.c.b16 %v349, %v341
    %v358 = vpack.c.b16 %v350, %v342
    %v359 = vpack.c.b16 %v351, %v343
    %v360 = vpack.c.b16 %v352, %v344
    %v361 = vpack.c.b16 %v353, %v345
    %v362 = vpack.c.b16 %v354, %v346
    %v363 = vpack.c.b16 %v355, %v347
    %v628 = vunpack.c.l.b16 %v66
    %v629 = vunpack.c.h.b16 %v66
    %v630 = vunpack.c.l.b16 %v67
    %v631 = vunpack.c.h.b16 %v67
    %v632 = vunpack.c.l.b16 %v68
    %v633 = vunpack.c.h.b16 %v68
    %v634 = vunpack.c.l.b16 %v69
    %v635 = vunpack.c.h.b16 %v69
    %v636 = vunpack.c.l.b16 %v70
    %v637 = vunpack.c.h.b16 %v70
    %v638 = vunpack.c.l.b16 %v71
    %v639 = vunpack.c.h.b16 %v71
    %v640 = vunpack.c.l.b16 %v72
    %v641 = vunpack.c.h.b16 %v72
    %v642 = vunpack.c.l.b16 %v73
    %v643 = vunpack.c.h.b16 %v73
    %v644 = vunpack.c.l.b16 %v74
    %v645 = vunpack.c.h.b16 %v74
    %v646 = vunpack.c.l.b16 %v75
    %v647 = vunpack.c.h.b16 %v75
    %v648 = vunpack.c.l.b16 %v76
    %v649 = vunpack.c.h.b16 %v76
    %v650 = vunpack.c.l.b16 %v77
    %v651 = vunpack.c.h.b16 %v77
    %v652 = vunpack.c.l.b16 %v78
    %v653 = vunpack.c.h.b16 %v78
    %v654 = vunpack.c.l.b16 %v79
    %v655 = vunpack.c.h.b16 %v79
    %v656 = vunpack.c.l.b16 %v80
    %v657 = vunpack.c.h.b16 %v80
    %v658 = vunpack.c.l.b16 %v81
    %v659 = vunpack.c.h.b16 %v81
    %v660 = vunpack.c.l.b16 %v82
    %v661 = vunpack.c.h.b16 %v82
    %v662 = vunpack.c.l.b16 %v83
    %v663 = vunpack.c.h.b16 %v83
    %v664 = vunpack.c.l.b16 %v84
    %v665 = vunpack.c.h.b16 %v84
    %v666 = vunpack.c.l.b16 %v85
    %v667 = vunpack.c.h.b16 %v85
    %v668 = vunpack.c.l.b16 %v86
    %v669 = vunpack.c.h.b16 %v86
    %v670 = vunpack.c.l.b16 %v87
    %v671 = vunpack.c.h.b16 %v87
    %v672 = vunpack.c.l.b16 %v88
    %v673 = vunpack.c.h.b16 %v88
    %v674 = vunpack.c.l.b16 %v89
    %v675 = vunpack.c.h.b16 %v89
    %v676 = vunpack.c.l.b16 %v90
    %v677 = vunpack.c.h.b16 %v90
    %v678 = vunpack.c.l.b16 %v91
    %v679 = vunpack.c.h.b16 %v91
    %v680 = vunpack.c.l.b16 %v92
    %v681 = vunpack.c.h.b16 %v92
    %v682 = vunpack.c.l.b16 %v93
    %v683 = vunpack.c.h.b16 %v93
    %v684 = vunpack.c.l.b16 %v94
    %v685 = vunpack.c.h.b16 %v94
    %v686 = vunpack.c.l.b16 %v95
    %v687 = vunpack.c.h.b16 %v95
    %v688 = vunpack.c.l.b16 %v96
    %v689 = vunpack.c.h.b16 %v96
    %v690 = vunpack.c.l.b16 %v97
    %v691 = vunpack.c.h.b16 %v97
    %v692 = vunpack.c.l.b16 %v98
    %v693 = vunpack.c.h.b16 %v98
    %v694 = vunpack.c.l.b16 %v99
    %v695 = vunpack.c.h.b16 %v99
    %v696 = vunpack.c.l.b16 %v100
    %v697 = vunpack.c.h.b16 %v100
    %v698 = vunpack.c.l.b16 %v101
    %v699 = vunpack.c.h.b16 %v101
    %v700 = vunpack.c.l.b16 %v102
    %v701 = vunpack.c.h.b16 %v102
    %v702 = vunpack.c.l.b16 %v103
    %v703 = vunpack.c.h.b16 %v103
    %v704 = vunpack.c.l.b16 %v104
    %v705 = vunpack.c.h.b16 %v104
    %v706 = vunpack.c.l.b16 %v105
    %v707 = vunpack.c.h.b16 %v105
    %v708 = vunpack.c.l.b16 %v106
    %v709 = vunpack.c.h.b16 %v106
    %v710 = vunpack.c.l.b16 %v107
    %v711 = vunpack.c.h.b16 %v107
    %v712 = vunpack.c.l.b16 %v108
    %v713 = vunpack.c.h.b16 %v108
    %v714 = vunpack.c.l.b16 %v109
    %v715 = vunpack.c.h.b16 %v109
    %v716 = vunpack.c.l.b16 %v110
    %v717 = vunpack.c.h.b16 %v110
    %v718 = vunpack.c.l.b16 %v111
    %v719 = vunpack.c.h.b16 %v111
    %v720 = vunpack.c.l.b16 %v112
    %v721 = vunpack.c.h.b16 %v112
    %v722 = vunpack.c.l.b16 %v113
    %v723 = vunpack.c.h.b16 %v113
    %v724 = vunpack.c.l.b16 %v114
    %v725 = vunpack.c.h.b16 %v114
    %v726 = vunpack.c.l.b16 %v115
    %v727 = vunpack.c.h.b16 %v115
    %v728 = vunpack.c.l.b16 %v116
    %v729 = vunpack.c.h.b16 %v116
    %v730 = vunpack.c.l.b16 %v117
    %v731 = vunpack.c.h.b16 %v117
    %v732 = vunpack.c.l.b16 %v118
    %v733 = vunpack.c.h.b16 %v118
    %v734 = vunpack.c.l.b16 %v119
    %v735 = vunpack.c.h.b16 %v119
    %v736 = vunpack.c.l.b16 %v120
    %v737 = vunpack.c.h.b16 %v120
    %v738 = vunpack.c.l.b16 %v121
    %v739 = vunpack.c.h.b16 %v121
    %v740 = vunpack.c.l.b16 %v122
    %v741 = vunpack.c.h.b16 %v122
    %v742 = vunpack.c.l.b16 %v123
    %v743 = vunpack.c.h.b16 %v123
    %v744 = vunpack.c.l.b16 %v124
    %v745 = vunpack.c.h.b16 %v124
    %v746 = vunpack.c.l.b16 %v125
    %v747 = vunpack.c.h.b16 %v125
    %v748 = vunpack.c.l.b16 %v126
    %v749 = vunpack.c.h.b16 %v126
    %v750 = vunpack.c.l.b16 %v127
    %v751 = vunpack.c.h.b16 %v127
    %v752 = vunpack.c.l.b16 %v128
    %v753 = vunpack.c.h.b16 %v128
    %v754 = vunpack.c.l.b16 %v129
    %v755 = vunpack.c.h.b16 %v129
    %v756 = vunpack.c.l.b16 %v130
    %v757 = vunpack.c.h.b16 %v130
    %v758 = vunpack.c.l.b16 %v131
    %v759 = vunpack.c.h.b16 %v131
    %v760 = vunpack.c.l.b16 %v132
    %v761 = vunpack.c.h.b16 %v132
    %v762 = vunpack.c.l.b16 %v133
    %v763 = vunpack.c.h.b16 %v133
    %v764 = vunpack.c.l.b16 %v134
    %v765 = vunpack.c.h.b16 %v134
    %v766 = vunpack.c.l.b16 %v135
    %v767 = vunpack.c.h.b16 %v135
    %v768 = vunpack.c.l.b16 %v136
    %v769 = vunpack.c.h.b16 %v136
    %v770 = vunpack.c.l.b16 %v137
    %v771 = vunpack.c.h.b16 %v137
    %v772 = vunpack.c.l.b16 %v138
    %v773 = vunpack.c.h.b16 %v138
    %v774 = vunpack.c.l.b16 %v139
    %v775 = vunpack.c.h.b16 %v139
    %v776 = vunpack.c.l.b16 %v140
    %v777 = vunpack.c.h.b16 %v140
    %v778 = vunpack.c.l.b16 %v141
    %v779 = vunpack.c.h.b16 %v141
    %v780 = vunpack.c.l.b16 %v142
    %v781 = vunpack.c.h.b16 %v142
    %v782 = vunpack.c.l.b16 %v143
    %v783 = vunpack.c.h.b16 %v143
    %v784 = vunpack.c.l.b16 %v144
    %v785 = vunpack.c.h.b16 %v144
    %v786 = vunpack.c.l.b16 %v145
    %v787 = vunpack.c.h.b16 %v145
    %v788 = vunpack.c.l.b16 %v146
    %v789 = vunpack.c.h.b16 %v146
    %v790 = vunpack.c.l.b16 %v147
    %v791 = vunpack.c.h.b16 %v147
    %v792 = vunpack.c.l.b16 %v148
    %v793 = vunpack.c.h.b16 %v148
    %v794 = vunpack.c.l.b16 %v149
    %v795 = vunpack.c.h.b16 %v149
    %v796 = vunpack.c.l.b16 %v150
    %v797 = vunpack.c.h.b16 %v150
    %v798 = vunpack.c.l.b16 %v151
    %v799 = vunpack.c.h.b16 %v151
    %v800 = vunpack.c.l.b16 %v152
    %v801 = vunpack.c.h.b16 %v152
    %v802 = vunpack.c.l.b16 %v153
    %v803 = vunpack.c.h.b16 %v153
    %v804 = vunpack.c.l.b16 %v154
    %v805 = vunpack.c.h.b16 %v154
    %v806 = vunpack.c.l.b16 %v155
    %v807 = vunpack.c.h.b16 %v155
    %v808 = vunpack.c.l.b16 %v156
    %v809 = vunpack.c.h.b16 %v156
    %v810 = vunpack.c.l.b16 %v157
    %v811 = vunpack.c.h.b16 %v157
    %v812 = vunpack.c.l.b16 %v158
    %v813 = vunpack.c.h.b16 %v158
    %v814 = vunpack.c.l.b16 %v159
    %v815 = vunpack.c.h.b16 %v159
    %v816 = vunpack.c.l.b16 %v160
    %v817 = vunpack.c.h.b16 %v160
    %v818 = vunpack.c.l.b16 %v161
    %v819 = vunpack.c.h.b16 %v161
    %v820 = vunpack.c.l.b16 %v162
    %v821 = vunpack.c.h.b16 %v162
    %v822 = vunpack.c.l.b16 %v163
    %v823 = vunpack.c.h.b16 %v163
    %v824 = vunpack.c.l.b16 %v164
    %v825 = vunpack.c.h.b16 %v164
    %v826 = vunpack.c.l.b16 %v165
    %v827 = vunpack.c.h.b16 %v165
    %v828 = vunpack.c.l.b16 %v166
    %v829 = vunpack.c.h.b16 %v166
    %v830 = vunpack.c.l.b16 %v167
    %v831 = vunpack.c.h.b16 %v167
    %v832 = vunpack.c.l.b16 %v168
    %v833 = vunpack.c.h.b16 %v168
    %v834 = vunpack.c.l.b16 %v169
    %v835 = vunpack.c.h.b16 %v169
    %v836 = vunpack.c.l.b16 %v170
    %v837 = vunpack.c.h.b16 %v170
    %v838 = vunpack.c.l.b16 %v171
    %v839 = vunpack.c.h.b16 %v171
    %v840 = vunpack.c.l.b16 %v172
    %v841 = vunpack.c.h.b16 %v172
    %v842 = vunpack.c.l.b16 %v173
    %v843 = vunpack.c.h.b16 %v173
    %v844 = vunpack.c.l.b16 %v174
    %v845 = vunpack.c.h.b16 %v174
    %v846 = vunpack.c.l.b16 %v175
    %v847 = vunpack.c.h.b16 %v175
    %v848 = vunpack.c.l.b16 %v176
    %v849 = vunpack.c.h.b16 %v176
    %v850 = vunpack.c.l.b16 %v177
    %v851 = vunpack.c.h.b16 %v177
    %v852 = vunpack.c.l.b16 %v178
    %v853 = vunpack.c.h.b16 %v178
    %v854 = vunpack.c.l.b16 %v179
    %v855 = vunpack.c.h.b16 %v179
    %v856 = vunpack.c.l.b16 %v180
    %v857 = vunpack.c.h.b16 %v180
    %v858 = vunpack.c.l.b16 %v181
    %v859 = vunpack.c.h.b16 %v181
    %v860 = vunpack.c.l.b16 %v182
    %v861 = vunpack.c.h.b16 %v182
    %v862 = vunpack.c.l.b16 %v183
    %v863 = vunpack.c.h.b16 %v183
    %v864 = vunpack.c.l.b16 %v184
    %v865 = vunpack.c.h.b16 %v184
    %v866 = vunpack.c.l.b16 %v185
    %v867 = vunpack.c.h.b16 %v185
    %v868 = vunpack.c.l.b16 %v186
    %v869 = vunpack.c.h.b16 %v186
    %v870 = vunpack.c.l.b16 %v187
    %v871 = vunpack.c.h.b16 %v187
    %v872 = vunpack.c.l.b16 %v188
    %v873 = vunpack.c.h.b16 %v188
    %v874 = vunpack.c.l.b16 %v189
    %v875 = vunpack.c.h.b16 %v189
    %v876 = vunpack.c.l.b16 %v190
    %v877 = vunpack.c.h.b16 %v190
    %v878 = vunpack.c.l.b16 %v191
    %v879 = vunpack.c.h.b16 %v191
    %v880 = vunpack.c.l.b16 %v192
    %v881 = vunpack.c.h.b16 %v192
    %v882 = vunpack.c.l.b16 %v193
    %v883 = vunpack.c.h.b16 %v193
    %v884 = vunpack.c.l.b16 %v194
    %v885 = vunpack.c.h.b16 %v194
    %v886 = vunpack.c.l.b16 %v195
    %v887 = vunpack.c.h.b16 %v195
    %v888 = vunpack.c.l.b16 %v196
    %v889 = vunpack.c.h.b16 %v196
    %v890 = vunpack.c.l.b16 %v197
    %v891 = vunpack.c.h.b16 %v197
    %v892 = vunpack.c.l.b16 %v198
    %v893 = vunpack.c.h.b16 %v198
    %v894 = vunpack.c.l.b16 %v199
    %v895 = vunpack.c.h.b16 %v199
    %v896 = vunpack.c.l.b16 %v200
    %v897 = vunpack.c.h.b16 %v200
    %v898 = vunpack.c.l.b16 %v201
    %v899 = vunpack.c.h.b16 %v201
    %v900 = vunpack.c.l.b16 %v202
    %v901 = vunpack.c.h.b16 %v202
    %v902 = vunpack.c.l.b16 %v203
    %v903 = vunpack.c.h.b16 %v203
    %v904 = vunpack.c.l.b16 %v204
    %v905 = vunpack.c.h.b16 %v204
    %v906 = vunpack.c.l.b16 %v205
    %v907 = vunpack.c.h.b16 %v205
    %v908 = vunpack.c.l.b16 %v206
    %v909 = vunpack.c.h.b16 %v206
    %v910 = vunpack.c.l.b16 %v207
    %v911 = vunpack.c.h.b16 %v207
    %v912 = vunpack.c.l.b16 %v208
    %v913 = vunpack.c.h.b16 %v208
    %v914 = vunpack.c.l.b16 %v209
    %v915 = vunpack.c.h.b16 %v209
    %v916 = vunpack.c.l.b16 %v210
    %v917 = vunpack.c.h.b16 %v210
    %v918 = vunpack.c.l.b16 %v211
    %v919 = vunpack.c.h.b16 %v211
    %v920 = vunpack.c.l.b16 %v212
    %v921 = vunpack.c.h.b16 %v212
    %v922 = vunpack.c.l.b16 %v213
    %v923 = vunpack.c.h.b16 %v213
    %v924 = vunpack.c.l.b16 %v214
    %v925 = vunpack.c.h.b16 %v214
    %v926 = vunpack.c.l.b16 %v215
    %v927 = vunpack.c.h.b16 %v215
    %v928 = vunpack.c.l.b16 %v216
    %v929 = vunpack.c.h.b16 %v216
    %v930 = vunpack.c.l.b16 %v217
    %v931 = vunpack.c.h.b16 %v217
    %v932 = vunpack.c.l.b16 %v218
    %v933 = vunpack.c.h.b16 %v218
    %v934 = vunpack.c.l.b16 %v219
    %v935 = vunpack.c.h.b16 %v219
    %v936 = vunpack.c.l.b16 %v220
    %v937 = vunpack.c.h.b16 %v220
    %v938 = vunpack.c.l.b16 %v221
    %v939 = vunpack.c.h.b16 %v221
    %v940 = vunpack.c.l.b16 %v222
    %v941 = vunpack.c.h.b16 %v222
    %v942 = vunpack.c.l.b16 %v223
    %v943 = vunpack.c.h.b16 %v223
    %v944 = vunpack.c.l.b16 %v224
    %v945 = vunpack.c.h.b16 %v224
    %v946 = vunpack.c.l.b16 %v225
    %v947 = vunpack.c.h.b16 %v225
    %v948 = vunpack.c.l.b16 %v226
    %v949 = vunpack.c.h.b16 %v226
    %v950 = vunpack.c.l.b16 %v227
    %v951 = vunpack.c.h.b16 %v227
    %v952 = vunpack.c.l.b16 %v228
    %v953 = vunpack.c.h.b16 %v228
    %v954 = vunpack.c.l.b16 %v229
    %v955 = vunpack.c.h.b16 %v229
    %v956 = vunpack.c.l.b16 %v230
    %v957 = vunpack.c.h.b16 %v230
    %v958 = vunpack.c.l.b16 %v231
    %v959 = vunpack.c.h.b16 %v231
    %v960 = vunpack.c.l.b16 %v232
    %v961 = vunpack.c.h.b16 %v232
    %v962 = vunpack.c.l.b16 %v233
    %v963 = vunpack.c.h.b16 %v233
    %v964 = vunpack.c.l.b16 %v234
    %v965 = vunpack.c.h.b16 %v234
    %v966 = vunpack.c.l.b16 %v235
    %v967 = vunpack.c.h.b16 %v235
    %v968 = vunpack.c.l.b16 %v236
    %v969 = vunpack.c.h.b16 %v236
    %v970 = vunpack.c.l.b16 %v237
    %v971 = vunpack.c.h.b16 %v237
    %v972 = vunpack.c.l.b16 %v238
    %v973 = vunpack.c.h.b16 %v238
    %v974 = vunpack.c.l.b16 %v239
    %v975 = vunpack.c.h.b16 %v239
    %v976 = vunpack.c.l.b16 %v240
    %v977 = vunpack.c.h.b16 %v240
    %v978 = vunpack.c.l.b16 %v241
    %v979 = vunpack.c.h.b16 %v241
    %v980 = vunpack.c.l.b16 %v242
    %v981 = vunpack.c.h.b16 %v242
    %v982 = vunpack.c.l.b16 %v243
    %v983 = vunpack.c.h.b16 %v243
    %v984 = vunpack.c.l.b16 %v244
    %v985 = vunpack.c.h.b16 %v244
    %v986 = vunpack.c.l.b16 %v245
    %v987 = vunpack.c.h.b16 %v245
    %v988 = vunpack.c.l.b16 %v246
    %v989 = vunpack.c.h.b16 %v246
    %v990 = vunpack.c.l.b16 %v247
    %v991 = vunpack.c.h.b16 %v247
    %v992 = vunpack.c.l.b16 %v248
    %v993 = vunpack.c.h.b16 %v248
    %v994 = vunpack.c.l.b16 %v249
    %v995 = vunpack.c.h.b16 %v249
    %v996 = vunpack.c.l.b16 %v250
    %v997 = vunpack.c.h.b16 %v250
    %v998 = vunpack.c.l.b16 %v251
    %v999 = vunpack.c.h.b16 %v251
    %v1000 = vunpack.c.l.b16 %v252
    %v1001 = vunpack.c.h.b16 %v252
    %v1002 = vunpack.c.l.b16 %v253
    %v1003 = vunpack.c.h.b16 %v253
    %v1004 = vunpack.c.l.b16 %v254
    %v1005 = vunpack.c.h.b16 %v254
    %v1006 = vunpack.c.l.b16 %v255
    %v1007 = vunpack.c.h.b16 %v255
    %v1008 = vunpack.c.l.b16 %v256
    %v1009 = vunpack.c.h.b16 %v256
    %v1010 = vunpack.c.l.b16 %v257
    %v1011 = vunpack.c.h.b16 %v257
    %v1012 = vunpack.c.l.b16 %v258
    %v1013 = vunpack.c.h.b16 %v258
    %v1014 = vunpack.c.l.b16 %v259
    %v1015 = vunpack.c.h.b16 %v259
    %v1016 = vunpack.c.l.b16 %v260
    %v1017 = vunpack.c.h.b16 %v260
    %v1018 = vunpack.c.l.b16 %v261
    %v1019 = vunpack.c.h.b16 %v261
    %v1020 = vunpack.c.l.b16 %v262
    %v1021 = vunpack.c.h.b16 %v262
    %v1022 = vunpack.c.l.b16 %v263
    %v1023 = vunpack.c.h.b16 %v263
    %v1024 = vunpack.c.l.b16 %v264
    %v1025 = vunpack.c.h.b16 %v264
    %v1026 = vunpack.c.l.b16 %v265
    %v1027 = vunpack.c.h.b16 %v265
    %v1028 = vunpack.c.l.b16 %v266
    %v1029 = vunpack.c.h.b16 %v266
    %v1030 = vunpack.c.l.b16 %v267
    %v1031 = vunpack.c.h.b16 %v267
    %v1032 = vunpack.c.l.b16 %v268
    %v1033 = vunpack.c.h.b16 %v268
    %v1034 = vunpack.c.l.b16 %v269
    %v1035 = vunpack.c.h.b16 %v269
    %v1036 = vunpack.c.l.b16 %v270
    %v1037 = vunpack.c.h.b16 %v270
    %v1038 = vunpack.c.l.b16 %v271
    %v1039 = vunpack.c.h.b16 %v271
    %v1040 = vunpack.c.l.b16 %v272
    %v1041 = vunpack.c.h.b16 %v272
    %v1042 = vunpack.c.l.b16 %v273
    %v1043 = vunpack.c.h.b16 %v273
    %v1044 = vunpack.c.l.b16 %v274
    %v1045 = vunpack.c.h.b16 %v274
    %v1046 = vunpack.c.l.b16 %v275
    %v1047 = vunpack.c.h.b16 %v275
    %v1048 = vunpack.c.l.b16 %v276
    %v1049 = vunpack.c.h.b16 %v276
    %v1050 = vunpack.c.l.b16 %v277
    %v1051 = vunpack.c.h.b16 %v277
    %v1052 = vunpack.c.l.b16 %v278
    %v1053 = vunpack.c.h.b16 %v278
    %v1054 = vunpack.c.l.b16 %v279
    %v1055 = vunpack.c.h.b16 %v279
    %v1056 = vunpack.c.l.b16 %v280
    %v1057 = vunpack.c.h.b16 %v280
    %v1058 = vunpack.c.l.b16 %v281
    %v1059 = vunpack.c.h.b16 %v281
    %v1060 = vunpack.c.l.b16 %v282
    %v1061 = vunpack.c.h.b16 %v282
    %v1062 = vunpack.c.l.b16 %v283
    %v1063 = vunpack.c.h.b16 %v283
    %v1064 = vunpack.c.l.b16 %v284
    %v1065 = vunpack.c.h.b16 %v284
    %v1066 = vunpack.c.l.b16 %v285
    %v1067 = vunpack.c.h.b16 %v285
    %v1068 = vunpack.c.l.b16 %v286
    %v1069 = vunpack.c.h.b16 %v286
    %v1070 = vunpack.c.l.b16 %v287
    %v1071 = vunpack.c.h.b16 %v287
    %v1072 = vunpack.c.l.b16 %v288
    %v1073 = vunpack.c.h.b16 %v288
    %v1074 = vunpack.c.l.b16 %v289
    %v1075 = vunpack.c.h.b16 %v289
    %v1076 = vunpack.c.l.b16 %v290
    %v1077 = vunpack.c.h.b16 %v290
    %v1078 = vunpack.c.l.b16 %v291
    %v1079 = vunpack.c.h.b16 %v291
    %v1080 = vunpack.c.l.b16 %v292
    %v1081 = vunpack.c.h.b16 %v292
    %v1082 = vunpack.c.l.b16 %v293
    %v1083 = vunpack.c.h.b16 %v293
    %v1084 = vunpack.c.l.b16 %v294
    %v1085 = vunpack.c.h.b16 %v294
    %v1086 = vunpack.c.l.b16 %v295
    %v1087 = vunpack.c.h.b16 %v295
    %v1088 = vunpack.c.l.b16 %v296
    %v1089 = vunpack.c.h.b16 %v296
    %v1090 = vunpack.c.l.b16 %v297
    %v1091 = vunpack.c.h.b16 %v297
    %v1092 = vunpack.c.l.b16 %v298
    %v1093 = vunpack.c.h.b16 %v298
    %v1094 = vunpack.c.l.b16 %v299
    %v1095 = vunpack.c.h.b16 %v299
    %v1096 = vunpack.c.l.b16 %v300
    %v1097 = vunpack.c.h.b16 %v300
    %v1098 = vunpack.c.l.b16 %v301
    %v1099 = vunpack.c.h.b16 %v301
    %v1100 = vunpack.c.l.b16 %v302
    %v1101 = vunpack.c.h.b16 %v302
    %v1102 = vunpack.c.l.b16 %v303
    %v1103 = vunpack.c.h.b16 %v303
    %v1104 = vunpack.c.l.b16 %v304
    %v1105 = vunpack.c.h.b16 %v304
    %v1106 = vunpack.c.l.b16 %v305
    %v1107 = vunpack.c.h.b16 %v305
    %v1108 = vunpack.c.l.b16 %v306
    %v1109 = vunpack.c.h.b16 %v306
    %v1110 = vunpack.c.l.b16 %v307
    %v1111 = vunpack.c.h.b16 %v307
    %v1112 = vunpack.c.l.b16 %v308
    %v1113 = vunpack.c.h.b16 %v308
    %v1114 = vunpack.c.l.b16 %v309
    %v1115 = vunpack.c.h.b16 %v309
    %v1116 = vunpack.c.l.b16 %v310
    %v1117 = vunpack.c.h.b16 %v310
    %v1118 = vunpack.c.l.b16 %v311
    %v1119 = vunpack.c.h.b16 %v311
    %v1120 = vunpack.c.l.b16 %v312
    %v1121 = vunpack.c.h.b16 %v312
    %v1122 = vunpack.c.l.b16 %v313
    %v1123 = vunpack.c.h.b16 %v313
    %v1124 = vunpack.c.l.b16 %v314
    %v1125 = vunpack.c.h.b16 %v314
    %v1126 = vunpack.c.l.b16 %v315
    %v1127 = vunpack.c.h.b16 %v315
    %v1128 = vunpack.c.l.b16 %v316
    %v1129 = vunpack.c.h.b16 %v316
    %v1130 = vunpack.c.l.b16 %v317
    %v1131 = vunpack.c.h.b16 %v317
    %v1132 = vunpack.c.l.b16 %v318
    %v1133 = vunpack.c.h.b16 %v318
    %v1134 = vunpack.c.l.b16 %v319
    %v1135 = vunpack.c.h.b16 %v319
    %v1136 = vunpack.c.l.b16 %v320
    %v1137 = vunpack.c.h.b16 %v320
    %v1138 = vunpack.c.l.b16 %v321
    %v1139 = vunpack.c.h.b16 %v321
    %v1140 = vpack.c.b16 %v632, %v628
    %v1141 = vpack.c.b16 %v633, %v629
    %v1142 = vpack.c.b16 %v634, %v630
    %v1143 = vpack.c.b16 %v635, %v631
    %v1144 = vpack.c.b16 %v640, %v636
    %v1145 = vpack.c.b16 %v641, %v637
    %v1146 = vpack.c.b16 %v642, %v638
    %v1147 = vpack.c.b16 %v643, %v639
    %v1148 = vpack.c.b16 %v648, %v644
    %v1149 = vpack.c.b16 %v649, %v645
    %v1150 = vpack.c.b16 %v650, %v646
    %v1151 = vpack.c.b16 %v651, %v647
    %v1152 = vpack.c.b16 %v656, %v652
    %v1153 = vpack.c.b16 %v657, %v653
    %v1154 = vpack.c.b16 %v658, %v654
    %v1155 = vpack.c.b16 %v659, %v655
    %v1156 = vpack.c.b16 %v664, %v660
    %v1157 = vpack.c.b16 %v665, %v661
    %v1158 = vpack.c.b16 %v666, %v662
    %v1159 = vpack.c.b16 %v667, %v663
    %v1160 = vpack.c.b16 %v672, %v668
    %v1161 = vpack.c.b16 %v673, %v669
    %v1162 = vpack.c.b16 %v674, %v670
    %v1163 = vpack.c.b16 %v675, %v671
    %v1164 = vpack.c.b16 %v680, %v676
    %v1165 = vpack.c.b16 %v681, %v677
    %v1166 = vpack.c.b16 %v682, %v678
    %v1167 = vpack.c.b16 %v683, %v679
    %v1168 = vpack.c.b16 %v688, %v684
    %v1169 = vpack.c.b16 %v689, %v685
    %v1170 = vpack.c.b16 %v690, %v686
    %v1171 = vpack.c.b16 %v691, %v687
    %v1172 = vpack.c.b16 %v696, %v692
    %v1173 = vpack.c.b16 %v697, %v693
    %v1174 = vpack.c.b16 %v698, %v694
    %v1175 = vpack.c.b16 %v699, %v695
    %v1176 = vpack.c.b16 %v704, %v700
    %v1177 = vpack.c.b16 %v705, %v701
    %v1178 = vpack.c.b16 %v706, %v702
    %v1179 = vpack.c.b16 %v707, %v703
    %v1180 = vpack.c.b16 %v712, %v708
    %v1181 = vpack.c.b16 %v713, %v709
    %v1182 = vpack.c.b16 %v714, %v710
    %v1183 = vpack.c.b16 %v715, %v711
    %v1184 = vpack.c.b16 %v720, %v716
    %v1185 = vpack.c.b16 %v721, %v717
    %v1186 = vpack.c.b16 %v722, %v718
    %v1187 = vpack.c.b16 %v723, %v719
    %v1188 = vpack.c.b16 %v728, %v724
    %v1189 = vpack.c.b16 %v729, %v725
    %v1190 = vpack.c.b16 %v730, %v726
    %v1191 = vpack.c.b16 %v731, %v727
    %v1192 = vpack.c.b16 %v736, %v732
    %v1193 = vpack.c.b16 %v737, %v733
    %v1194 = vpack.c.b16 %v738, %v734
    %v1195 = vpack.c.b16 %v739, %v735
    %v1196 = vpack.c.b16 %v744, %v740
    %v1197 = vpack.c.b16 %v745, %v741
    %v1198 = vpack.c.b16 %v746, %v742
    %v1199 = vpack.c.b16 %v747, %v743
    %v1200 = vpack.c.b16 %v752, %v748
    %v1201 = vpack.c.b16 %v753, %v749
    %v1202 = vpack.c.b16 %v754, %v750
    %v1203 = vpack.c.b16 %v755, %v751
    %v1204 = vpack.c.b16 %v760, %v756
    %v1205 = vpack.c.b16 %v761, %v757
    %v1206 = vpack.c.b16 %v762, %v758
    %v1207 = vpack.c.b16 %v763, %v759
    %v1208 = vpack.c.b16 %v768, %v764
    %v1209 = vpack.c.b16 %v769, %v765
    %v1210 = vpack.c.b16 %v770, %v766
    %v1211 = vpack.c.b16 %v771, %v767
    %v1212 = vpack.c.b16 %v776, %v772
    %v1213 = vpack.c.b16 %v777, %v773
    %v1214 = vpack.c.b16 %v778, %v774
    %v1215 = vpack.c.b16 %v779, %v775
    %v1216 = vpack.c.b16 %v784, %v780
    %v1217 = vpack.c.b16 %v785, %v781
    %v1218 = vpack.c.b16 %v786, %v782
    %v1219 = vpack.c.b16 %v787, %v783
    %v1220 = vpack.c.b16 %v792, %v788
    %v1221 = vpack.c.b16 %v793, %v789
    %v1222 = vpack.c.b16 %v794, %v790
    %v1223 = vpack.c.b16 %v795, %v791
    %v1224 = vpack.c.b16 %v800, %v796
    %v1225 = vpack.c.b16 %v801, %v797
    %v1226 = vpack.c.b16 %v802, %v798
    %v1227 = vpack.c.b16 %v803, %v799
    %v1228 = vpack.c.b16 %v808, %v804
    %v1229 = vpack.c.b16 %v809, %v805
    %v1230 = vpack.c.b16 %v810, %v806
    %v1231 = vpack.c.b16 %v811, %v807
    %v1232 = vpack.c.b16 %v816, %v812
    %v1233 = vpack.c.b16 %v817, %v813
    %v1234 = vpack.c.b16 %v818, %v814
    %v1235 = vpack.c.b16 %v819, %v815
    %v1236 = vpack.c.b16 %v824, %v820
    %v1237 = vpack.c.b16 %v825, %v821
    %v1238 = vpack.c.b16 %v826, %v822
    %v1239 = vpack.c.b16 %v827, %v823
    %v1240 = vpack.c.b16 %v832, %v828
    %v1241 = vpack.c.b16 %v833, %v829
    %v1242 = vpack.c.b16 %v834, %v830
    %v1243 = vpack.c.b16 %v835, %v831
    %v1244 = vpack.c.b16 %v840, %v836
    %v1245 = vpack.c.b16 %v841, %v837
    %v1246 = vpack.c.b16 %v842, %v838
    %v1247 = vpack.c.b16 %v843, %v839
    %v1248 = vpack.c.b16 %v848, %v844
    %v1249 = vpack.c.b16 %v849, %v845
    %v1250 = vpack.c.b16 %v850, %v846
    %v1251 = vpack.c.b16 %v851, %v847
    %v1252 = vpack.c.b16 %v856, %v852
    %v1253 = vpack.c.b16 %v857, %v853
    %v1254 = vpack.c.b16 %v858, %v854
    %v1255 = vpack.c.b16 %v859, %v855
    %v1256 = vpack.c.b16 %v864, %v860
    %v1257 = vpack.c.b16 %v865, %v861
    %v1258 = vpack.c.b16 %v866, %v862
    %v1259 = vpack.c.b16 %v867, %v863
    %v1260 = vpack.c.b16 %v872, %v868
    %v1261 = vpack.c.b16 %v873, %v869
    %v1262 = vpack.c.b16 %v874, %v870
    %v1263 = vpack.c.b16 %v875, %v871
    %v1264 = vpack.c.b16 %v880, %v876
    %v1265 = vpack.c.b16 %v881, %v877
    %v1266 = vpack.c.b16 %v882, %v878
    %v1267 = vpack.c.b16 %v883, %v879
    %v1268 = vpack.c.b16 %v888, %v884
    %v1269 = vpack.c.b16 %v889, %v885
    %v1270 = vpack.c.b16 %v890, %v886
    %v1271 = vpack.c.b16 %v891, %v887
    %v1272 = vpack.c.b16 %v896, %v892
    %v1273 = vpack.c.b16 %v897, %v893
    %v1274 = vpack.c.b16 %v898, %v894
    %v1275 = vpack.c.b16 %v899, %v895
    %v1276 = vpack.c.b16 %v904, %v900
    %v1277 = vpack.c.b16 %v905, %v901
    %v1278 = vpack.c.b16 %v906, %v902
    %v1279 = vpack.c.b16 %v907, %v903
    %v1280 = vpack.c.b16 %v912, %v908
    %v1281 = vpack.c.b16 %v913, %v909
    %v1282 = vpack.c.b16 %v914, %v910
    %v1283 = vpack.c.b16 %v915, %v911
    %v1284 = vpack.c.b16 %v920, %v916
    %v1285 = vpack.c.b16 %v921, %v917
    %v1286 = vpack.c.b16 %v922, %v918
    %v1287 = vpack.c.b16 %v923, %v919
    %v1288 = vpack.c.b16 %v928, %v924
    %v1289 = vpack.c.b16 %v929, %v925
    %v1290 = vpack.c.b16 %v930, %v926
    %v1291 = vpack.c.b16 %v931, %v927
    %v1292 = vpack.c.b16 %v936, %v932
    %v1293 = vpack.c.b16 %v937, %v933
    %v1294 = vpack.c.b16 %v938, %v934
    %v1295 = vpack.c.b16 %v939, %v935
    %v1296 = vpack.c.b16 %v944, %v940
    %v1297 = vpack.c.b16 %v945, %v941
    %v1298 = vpack.c.b16 %v946, %v942
    %v1299 = vpack.c.b16 %v947, %v943
    %v1300 = vpack.c.b16 %v952, %v948
    %v1301 = vpack.c.b16 %v953, %v949
    %v1302 = vpack.c.b16 %v954, %v950
    %v1303 = vpack.c.b16 %v955, %v951
    %v1304 = vpack.c.b16 %v960, %v956
    %v1305 = vpack.c.b16 %v961, %v957
    %v1306 = vpack.c.b16 %v962, %v958
    %v1307 = vpack.c.b16 %v963, %v959
    %v1308 = vpack.c.b16 %v968, %v964
    %v1309 = vpack.c.b16 %v969, %v965
    %v1310 = vpack.c.b16 %v970, %v966
    %v1311 = vpack.c.b16 %v971, %v967
    %v1312 = vpack.c.b16 %v976, %v972
    %v1313 = vpack.c.b16 %v977, %v973
    %v1314 = vpack.c.b16 %v978, %v974
    %v1315 = vpack.c.b16 %v979, %v975
    %v1316 = vpack.c.b16 %v984, %v980
    %v1317 = vpack.c.b16 %v985, %v981
    %v1318 = vpack.c.b16 %v986, %v982
    %v1319 = vpack.c.b16 %v987, %v983
    %v1320 = vpack.c.b16 %v992, %v988
    %v1321 = vpack.c.b16 %v993, %v989
    %v1322 = vpack.c.b16 %v994, %v990
    %v1323 = vpack.c.b16 %v995, %v991
    %v1324 = vpack.c.b16 %v1000, %v996
    %v1325 = vpack.c.b16 %v1001, %v997
    %v1326 = vpack.c.b16 %v1002, %v998
    %v1327 = vpack.c.b16 %v1003, %v999
    %v1328 = vpack.c.b16 %v1008, %v1004
    %v1329 = vpack.c.b16 %v1009, %v1005
    %v1330 = vpack.c.b16 %v1010, %v1006
    %v1331 = vpack.c.b16 %v1011, %v1007
    %v1332 = vpack.c.b16 %v1016, %v1012
    %v1333 = vpack.c.b16 %v1017, %v1013
    %v1334 = vpack.c.b16 %v1018, %v1014
    %v1335 = vpack.c.b16 %v1019, %v1015
    %v1336 = vpack.c.b16 %v1024, %v1020
    %v1337 = vpack.c.b16 %v1025, %v1021
    %v1338 = vpack.c.b16 %v1026, %v1022
    %v1339 = vpack.c.b16 %v1027, %v1023
    %v1340 = vpack.c.b16 %v1032, %v1028
    %v1341 = vpack.c.b16 %v1033, %v1029
    %v1342 = vpack.c.b16 %v1034, %v1030
    %v1343 = vpack.c.b16 %v1035, %v1031
    %v1344 = vpack.c.b16 %v1040, %v1036
    %v1345 = vpack.c.b16 %v1041, %v1037
    %v1346 = vpack.c.b16 %v1042, %v1038
    %v1347 = vpack.c.b16 %v1043, %v1039
    %v1348 = vpack.c.b16 %v1048, %v1044
    %v1349 = vpack.c.b16 %v1049, %v1045
    %v1350 = vpack.c.b16 %v1050, %v1046
    %v1351 = vpack.c.b16 %v1051, %v1047
    %v1352 = vpack.c.b16 %v1056, %v1052
    %v1353 = vpack.c.b16 %v1057, %v1053
    %v1354 = vpack.c.b16 %v1058, %v1054
    %v1355 = vpack.c.b16 %v1059, %v1055
    %v1356 = vpack.c.b16 %v1064, %v1060
    %v1357 = vpack.c.b16 %v1065, %v1061
    %v1358 = vpack.c.b16 %v1066, %v1062
    %v1359 = vpack.c.b16 %v1067, %v1063
    %v1360 = vpack.c.b16 %v1072, %v1068
    %v1361 = vpack.c.b16 %v1073, %v1069
    %v1362 = vpack.c.b16 %v1074, %v1070
    %v1363 = vpack.c.b16 %v1075, %v1071
    %v1364 = vpack.c.b16 %v1080, %v1076
    %v1365 = vpack.c.b16 %v1081, %v1077
    %v1366 = vpack.c.b16 %v1082, %v1078
    %v1367 = vpack.c.b16 %v1083, %v1079
    %v1368 = vpack.c.b16 %v1088, %v1084
    %v1369 = vpack.c.b16 %v1089, %v1085
    %v1370 = vpack.c.b16 %v1090, %v1086
    %v1371 = vpack.c.b16 %v1091, %v1087
    %v1372 = vpack.c.b16 %v1096, %v1092
    %v1373 = vpack.c.b16 %v1097, %v1093
    %v1374 = vpack.c.b16 %v1098, %v1094
    %v1375 = vpack.c.b16 %v1099, %v1095
    %v1376 = vpack.c.b16 %v1104, %v1100
    %v1377 = vpack.c.b16 %v1105, %v1101
    %v1378 = vpack.c.b16 %v1106, %v1102
    %v1379 = vpack.c.b16 %v1107, %v1103
    %v1380 = vpack.c.b16 %v1112, %v1108
    %v1381 = vpack.c.b16 %v1113, %v1109
    %v1382 = vpack.c.b16 %v1114, %v1110
    %v1383 = vpack.c.b16 %v1115, %v1111
    %v1384 = vpack.c.b16 %v1120, %v1116
    %v1385 = vpack.c.b16 %v1121, %v1117
    %v1386 = vpack.c.b16 %v1122, %v1118
    %v1387 = vpack.c.b16 %v1123, %v1119
    %v1388 = vpack.c.b16 %v1128, %v1124
    %v1389 = vpack.c.b16 %v1129, %v1125
    %v1390 = vpack.c.b16 %v1130, %v1126
    %v1391 = vpack.c.b16 %v1131, %v1127
    %v1392 = vpack.c.b16 %v1136, %v1132
    %v1393 = vpack.c.b16 %v1137, %v1133
    %v1394 = vpack.c.b16 %v1138, %v1134
    %v1395 = vpack.c.b16 %v1139, %v1135
    %1652 = vmatpush.bf16.msra.mxu0 %v1168
    %1653 = vmatpush.bf16.msra.mxu0 %v1164
    %1654 = vmatpush.bf16.msra.mxu0 %v1160
    %1655 = vmatpush.bf16.msra.mxu0 %v1156
    %1656 = vmatpush.bf16.msra.mxu0 %v1152
    %1657 = vmatpush.bf16.msra.mxu0 %v1148
    %1658 = vmatpush.bf16.msra.mxu0 %v1144
    %1659 = vmatpush.bf16.msra.mxu0 %v1140
    %1660 = vmatmul.bf16.gmra.mxu0 %v356
    %v1661 = vpop.f32.mrf.mxu0
    %v1662 = vadd.f32 %v324, %v1661
    %v1663 = vpop.f32.mrf.mxu0
    %v1664 = vadd.f32 %v324, %v1663
    %1665 = vdwg.mxu0
    %1666 = vmatpush.bf16.msra.mxu0 %v1200
    %1667 = vmatpush.bf16.msra.mxu0 %v1196
    %1668 = vmatpush.bf16.msra.mxu0 %v1192
    %1669 = vmatpush.bf16.msra.mxu0 %v1188
    %1670 = vmatpush.bf16.msra.mxu0 %v1184
    %1671 = vmatpush.bf16.msra.mxu0 %v1180
    %1672 = vmatpush.bf16.msra.mxu0 %v1176
    %1673 = vmatpush.bf16.msra.mxu0 %v1172
    %1674 = vmatmul.bf16.gmra.mxu0 %v357
    %v1675 = vpop.f32.mrf.mxu0
    %v1676 = vadd.f32 %v1662, %v1675
    %v1677 = vpop.f32.mrf.mxu0
    %v1678 = vadd.f32 %v1664, %v1677
    %1679 = vdwg.mxu0
    %1680 = vmatpush.bf16.msra.mxu0 %v1232
    %1681 = vmatpush.bf16.msra.mxu0 %v1228
    %1682 = vmatpush.bf16.msra.mxu0 %v1224
    %1683 = vmatpush.bf16.msra.mxu0 %v1220
    %1684 = vmatpush.bf16.msra.mxu0 %v1216
    %1685 = vmatpush.bf16.msra.mxu0 %v1212
    %1686 = vmatpush.bf16.msra.mxu0 %v1208
    %1687 = vmatpush.bf16.msra.mxu0 %v1204
    %1688 = vmatmul.bf16.gmra.mxu0 %v358
    %v1689 = vpop.f32.mrf.mxu0
    %v1690 = vadd.f32 %v1676, %v1689
    %v1691 = vpop.f32.mrf.mxu0
    %v1692 = vadd.f32 %v1678, %v1691
    %1693 = vdwg.mxu0
    %1694 = vmatpush.bf16.msra.mxu0 %v1264
    %1695 = vmatpush.bf16.msra.mxu0 %v1260
    %1696 = vmatpush.bf16.msra.mxu0 %v1256
    %1697 = vmatpush.bf16.msra.mxu0 %v1252
    %1698 = vmatpush.bf16.msra.mxu0 %v1248
    %1699 = vmatpush.bf16.msra.mxu0 %v1244
    %1700 = vmatpush.bf16.msra.mxu0 %v1240
    %1701 = vmatpush.bf16.msra.mxu0 %v1236
    %1702 = vmatmul.bf16.gmra.mxu0 %v359
    %v1703 = vpop.f32.mrf.mxu0
    %v1704 = vadd.f32 %v1690, %v1703
    %v1705 = vpop.f32.mrf.mxu0
    %v1706 = vadd.f32 %v1692, %v1705
    %1707 = vdwg.mxu0
    %1708 = vmatpush.bf16.msra.mxu0 %v1296
    %1709 = vmatpush.bf16.msra.mxu0 %v1292
    %1710 = vmatpush.bf16.msra.mxu0 %v1288
    %1711 = vmatpush.bf16.msra.mxu0 %v1284
    %1712 = vmatpush.bf16.msra.mxu0 %v1280
    %1713 = vmatpush.bf16.msra.mxu0 %v1276
    %1714 = vmatpush.bf16.msra.mxu0 %v1272
    %1715 = vmatpush.bf16.msra.mxu0 %v1268
    %1716 = vmatmul.bf16.gmra.mxu0 %v360
    %v1717 = vpop.f32.mrf.mxu0
    %v1718 = vadd.f32 %v1704, %v1717
    %v1719 = vpop.f32.mrf.mxu0
    %v1720 = vadd.f32 %v1706, %v1719
    %1721 = vdwg.mxu0
    %1722 = vmatpush.bf16.msra.mxu0 %v1328
    %1723 = vmatpush.bf16.msra.mxu0 %v1324
    %1724 = vmatpush.bf16.msra.mxu0 %v1320
    %1725 = vmatpush.bf16.msra.mxu0 %v1316
    %1726 = vmatpush.bf16.msra.mxu0 %v1312
    %1727 = vmatpush.bf16.msra.mxu0 %v1308
    %1728 = vmatpush.bf16.msra.mxu0 %v1304
    %1729 = vmatpush.bf16.msra.mxu0 %v1300
    %1730 = vmatmul.bf16.gmra.mxu0 %v361
    %v1731 = vpop.f32.mrf.mxu0
    %v1732 = vadd.f32 %v1718, %v1731
    %v1733 = vpop.f32.mrf.mxu0
    %v1734 = vadd.f32 %v1720, %v1733
    %1735 = vdwg.mxu0
    %1736 = vmatpush.bf16.msra.mxu0 %v1360
    %1737 = vmatpush.bf16.msra.mxu0 %v1356
    %1738 = vmatpush.bf16.msra.mxu0 %v1352
    %1739 = vmatpush.bf16.msra.mxu0 %v1348
    %1740 = vmatpush.bf16.msra.mxu0 %v1344
    %1741 = vmatpush.bf16.msra.mxu0 %v1340
    %1742 = vmatpush.bf16.msra.mxu0 %v1336
    %1743 = vmatpush.bf16.msra.mxu0 %v1332
    %1744 = vmatmul.bf16.gmra.mxu0 %v362
    %v1745 = vpop.f32.mrf.mxu0
    %v1746 = vadd.f32 %v1732, %v1745
    %v1747 = vpop.f32.mrf.mxu0
    %v1748 = vadd.f32 %v1734, %v1747
    %1749 = vdwg.mxu0
    %1750 = vmatpush.bf16.msra.mxu0 %v1392
    %1751 = vmatpush.bf16.msra.mxu0 %v1388
    %1752 = vmatpush.bf16.msra.mxu0 %v1384
    %1753 = vmatpush.bf16.msra.mxu0 %v1380
    %1754 = vmatpush.bf16.msra.mxu0 %v1376
    %1755 = vmatpush.bf16.msra.mxu0 %v1372
    %1756 = vmatpush.bf16.msra.mxu0 %v1368
    %1757 = vmatpush.bf16.msra.mxu0 %v1364
    %1758 = vmatmul.bf16.gmra.mxu0 %v363
    %v1759 = vpop.f32.mrf.mxu0
    %v1760 = vadd.f32 %v1746, %v1759
    %v1761 = vpop.f32.mrf.mxu0
    %v1762 = vadd.f32 %v1748, %v1761
    %1763 = vdwg.mxu0
    %1764 = vmatpush.bf16.msra.mxu0 %v1169
    %1765 = vmatpush.bf16.msra.mxu0 %v1165
    %1766 = vmatpush.bf16.msra.mxu0 %v1161
    %1767 = vmatpush.bf16.msra.mxu0 %v1157
    %1768 = vmatpush.bf16.msra.mxu0 %v1153
    %1769 = vmatpush.bf16.msra.mxu0 %v1149
    %1770 = vmatpush.bf16.msra.mxu0 %v1145
    %1771 = vmatpush.bf16.msra.mxu0 %v1141
    %1772 = vmatmul.bf16.gmra.mxu0 %v356
    %v1773 = vpop.f32.mrf.mxu0
    %v1774 = vadd.f32 %v325, %v1773
    %v1775 = vpop.f32.mrf.mxu0
    %v1776 = vadd.f32 %v325, %v1775
    %1777 = vdwg.mxu0
    %1778 = vmatpush.bf16.msra.mxu0 %v1201
    %1779 = vmatpush.bf16.msra.mxu0 %v1197
    %1780 = vmatpush.bf16.msra.mxu0 %v1193
    %1781 = vmatpush.bf16.msra.mxu0 %v1189
    %1782 = vmatpush.bf16.msra.mxu0 %v1185
    %1783 = vmatpush.bf16.msra.mxu0 %v1181
    %1784 = vmatpush.bf16.msra.mxu0 %v1177
    %1785 = vmatpush.bf16.msra.mxu0 %v1173
    %1786 = vmatmul.bf16.gmra.mxu0 %v357
    %v1787 = vpop.f32.mrf.mxu0
    %v1788 = vadd.f32 %v1774, %v1787
    %v1789 = vpop.f32.mrf.mxu0
    %v1790 = vadd.f32 %v1776, %v1789
    %1791 = vdwg.mxu0
    %1792 = vmatpush.bf16.msra.mxu0 %v1233
    %1793 = vmatpush.bf16.msra.mxu0 %v1229
    %1794 = vmatpush.bf16.msra.mxu0 %v1225
    %1795 = vmatpush.bf16.msra.mxu0 %v1221
    %1796 = vmatpush.bf16.msra.mxu0 %v1217
    %1797 = vmatpush.bf16.msra.mxu0 %v1213
    %1798 = vmatpush.bf16.msra.mxu0 %v1209
    %1799 = vmatpush.bf16.msra.mxu0 %v1205
    %1800 = vmatmul.bf16.gmra.mxu0 %v358
    %v1801 = vpop.f32.mrf.mxu0
    %v1802 = vadd.f32 %v1788, %v1801
    %v1803 = vpop.f32.mrf.mxu0
    %v1804 = vadd.f32 %v1790, %v1803
    %1805 = vdwg.mxu0
    %1806 = vmatpush.bf16.msra.mxu0 %v1265
    %1807 = vmatpush.bf16.msra.mxu0 %v1261
    %1808 = vmatpush.bf16.msra.mxu0 %v1257
    %1809 = vmatpush.bf16.msra.mxu0 %v1253
    %1810 = vmatpush.bf16.msra.mxu0 %v1249
    %1811 = vmatpush.bf16.msra.mxu0 %v1245
    %1812 = vmatpush.bf16.msra.mxu0 %v1241
    %1813 = vmatpush.bf16.msra.mxu0 %v1237
    %1814 = vmatmul.bf16.gmra.mxu0 %v359
    %v1815 = vpop.f32.mrf.mxu0
    %v1816 = vadd.f32 %v1802, %v1815
    %v1817 = vpop.f32.mrf.mxu0
    %v1818 = vadd.f32 %v1804, %v1817
    %1819 = vdwg.mxu0
    %1820 = vmatpush.bf16.msra.mxu0 %v1297
    %1821 = vmatpush.bf16.msra.mxu0 %v1293
    %1822 = vmatpush.bf16.msra.mxu0 %v1289
    %1823 = vmatpush.bf16.msra.mxu0 %v1285
    %1824 = vmatpush.bf16.msra.mxu0 %v1281
    %1825 = vmatpush.bf16.msra.mxu0 %v1277
    %1826 = vmatpush.bf16.msra.mxu0 %v1273
    %1827 = vmatpush.bf16.msra.mxu0 %v1269
    %1828 = vmatmul.bf16.gmra.mxu0 %v360
    %v1829 = vpop.f32.mrf.mxu0
    %v1830 = vadd.f32 %v1816, %v1829
    %v1831 = vpop.f32.mrf.mxu0
    %v1832 = vadd.f32 %v1818, %v1831
    %1833 = vdwg.mxu0
    %1834 = vmatpush.bf16.msra.mxu0 %v1329
    %1835 = vmatpush.bf16.msra.mxu0 %v1325
    %1836 = vmatpush.bf16.msra.mxu0 %v1321
    %1837 = vmatpush.bf16.msra.mxu0 %v1317
    %1838 = vmatpush.bf16.msra.mxu0 %v1313
    %1839 = vmatpush.bf16.msra.mxu0 %v1309
    %1840 = vmatpush.bf16.msra.mxu0 %v1305
    %1841 = vmatpush.bf16.msra.mxu0 %v1301
    %1842 = vmatmul.bf16.gmra.mxu0 %v361
    %v1843 = vpop.f32.mrf.mxu0
    %v1844 = vadd.f32 %v1830, %v1843
    %v1845 = vpop.f32.mrf.mxu0
    %v1846 = vadd.f32 %v1832, %v1845
    %1847 = vdwg.mxu0
    %1848 = vmatpush.bf16.msra.mxu0 %v1361
    %1849 = vmatpush.bf16.msra.mxu0 %v1357
    %1850 = vmatpush.bf16.msra.mxu0 %v1353
    %1851 = vmatpush.bf16.msra.mxu0 %v1349
    %1852 = vmatpush.bf16.msra.mxu0 %v1345
    %1853 = vmatpush.bf16.msra.mxu0 %v1341
    %1854 = vmatpush.bf16.msra.mxu0 %v1337
    %1855 = vmatpush.bf16.msra.mxu0 %v1333
    %1856 = vmatmul.bf16.gmra.mxu0 %v362
    %v1857 = vpop.f32.mrf.mxu0
    %v1858 = vadd.f32 %v1844, %v1857
    %v1859 = vpop.f32.mrf.mxu0
    %v1860 = vadd.f32 %v1846, %v1859
    %1861 = vdwg.mxu0
    %1862 = vmatpush.bf16.msra.mxu0 %v1393
    %1863 = vmatpush.bf16.msra.mxu0 %v1389
    %1864 = vmatpush.bf16.msra.mxu0 %v1385
    %1865 = vmatpush.bf16.msra.mxu0 %v1381
    %1866 = vmatpush.bf16.msra.mxu0 %v1377
    %1867 = vmatpush.bf16.msra.mxu0 %v1373
    %1868 = vmatpush.bf16.msra.mxu0 %v1369
    %1869 = vmatpush.bf16.msra.mxu0 %v1365
    %1870 = vmatmul.bf16.gmra.mxu0 %v363
    %v1871 = vpop.f32.mrf.mxu0
    %v1872 = vadd.f32 %v1858, %v1871
    %v1873 = vpop.f32.mrf.mxu0
    %v1874 = vadd.f32 %v1860, %v1873
    %1875 = vdwg.mxu0
    %1876 = vmatpush.bf16.msra.mxu0 %v1170
    %1877 = vmatpush.bf16.msra.mxu0 %v1166
    %1878 = vmatpush.bf16.msra.mxu0 %v1162
    %1879 = vmatpush.bf16.msra.mxu0 %v1158
    %1880 = vmatpush.bf16.msra.mxu0 %v1154
    %1881 = vmatpush.bf16.msra.mxu0 %v1150
    %1882 = vmatpush.bf16.msra.mxu0 %v1146
    %1883 = vmatpush.bf16.msra.mxu0 %v1142
    %1884 = vmatmul.bf16.gmra.mxu0 %v356
    %v1885 = vpop.f32.mrf.mxu0
    %v1886 = vadd.f32 %v326, %v1885
    %v1887 = vpop.f32.mrf.mxu0
    %v1888 = vadd.f32 %v326, %v1887
    %1889 = vdwg.mxu0
    %1890 = vmatpush.bf16.msra.mxu0 %v1202
    %1891 = vmatpush.bf16.msra.mxu0 %v1198
    %1892 = vmatpush.bf16.msra.mxu0 %v1194
    %1893 = vmatpush.bf16.msra.mxu0 %v1190
    %1894 = vmatpush.bf16.msra.mxu0 %v1186
    %1895 = vmatpush.bf16.msra.mxu0 %v1182
    %1896 = vmatpush.bf16.msra.mxu0 %v1178
    %1897 = vmatpush.bf16.msra.mxu0 %v1174
    %1898 = vmatmul.bf16.gmra.mxu0 %v357
    %v1899 = vpop.f32.mrf.mxu0
    %v1900 = vadd.f32 %v1886, %v1899
    %v1901 = vpop.f32.mrf.mxu0
    %v1902 = vadd.f32 %v1888, %v1901
    %1903 = vdwg.mxu0
    %1904 = vmatpush.bf16.msra.mxu0 %v1234
    %1905 = vmatpush.bf16.msra.mxu0 %v1230
    %1906 = vmatpush.bf16.msra.mxu0 %v1226
    %1907 = vmatpush.bf16.msra.mxu0 %v1222
    %1908 = vmatpush.bf16.msra.mxu0 %v1218
    %1909 = vmatpush.bf16.msra.mxu0 %v1214
    %1910 = vmatpush.bf16.msra.mxu0 %v1210
    %1911 = vmatpush.bf16.msra.mxu0 %v1206
    %1912 = vmatmul.bf16.gmra.mxu0 %v358
    %v1913 = vpop.f32.mrf.mxu0
    %v1914 = vadd.f32 %v1900, %v1913
    %v1915 = vpop.f32.mrf.mxu0
    %v1916 = vadd.f32 %v1902, %v1915
    %1917 = vdwg.mxu0
    %1918 = vmatpush.bf16.msra.mxu0 %v1266
    %1919 = vmatpush.bf16.msra.mxu0 %v1262
    %1920 = vmatpush.bf16.msra.mxu0 %v1258
    %1921 = vmatpush.bf16.msra.mxu0 %v1254
    %1922 = vmatpush.bf16.msra.mxu0 %v1250
    %1923 = vmatpush.bf16.msra.mxu0 %v1246
    %1924 = vmatpush.bf16.msra.mxu0 %v1242
    %1925 = vmatpush.bf16.msra.mxu0 %v1238
    %1926 = vmatmul.bf16.gmra.mxu0 %v359
    %v1927 = vpop.f32.mrf.mxu0
    %v1928 = vadd.f32 %v1914, %v1927
    %v1929 = vpop.f32.mrf.mxu0
    %v1930 = vadd.f32 %v1916, %v1929
    %1931 = vdwg.mxu0
    %1932 = vmatpush.bf16.msra.mxu0 %v1298
    %1933 = vmatpush.bf16.msra.mxu0 %v1294
    %1934 = vmatpush.bf16.msra.mxu0 %v1290
    %1935 = vmatpush.bf16.msra.mxu0 %v1286
    %1936 = vmatpush.bf16.msra.mxu0 %v1282
    %1937 = vmatpush.bf16.msra.mxu0 %v1278
    %1938 = vmatpush.bf16.msra.mxu0 %v1274
    %1939 = vmatpush.bf16.msra.mxu0 %v1270
    %1940 = vmatmul.bf16.gmra.mxu0 %v360
    %v1941 = vpop.f32.mrf.mxu0
    %v1942 = vadd.f32 %v1928, %v1941
    %v1943 = vpop.f32.mrf.mxu0
    %v1944 = vadd.f32 %v1930, %v1943
    %1945 = vdwg.mxu0
    %1946 = vmatpush.bf16.msra.mxu0 %v1330
    %1947 = vmatpush.bf16.msra.mxu0 %v1326
    %1948 = vmatpush.bf16.msra.mxu0 %v1322
    %1949 = vmatpush.bf16.msra.mxu0 %v1318
    %1950 = vmatpush.bf16.msra.mxu0 %v1314
    %1951 = vmatpush.bf16.msra.mxu0 %v1310
    %1952 = vmatpush.bf16.msra.mxu0 %v1306
    %1953 = vmatpush.bf16.msra.mxu0 %v1302
    %1954 = vmatmul.bf16.gmra.mxu0 %v361
    %v1955 = vpop.f32.mrf.mxu0
    %v1956 = vadd.f32 %v1942, %v1955
    %v1957 = vpop.f32.mrf.mxu0
    %v1958 = vadd.f32 %v1944, %v1957
    %1959 = vdwg.mxu0
    %1960 = vmatpush.bf16.msra.mxu0 %v1362
    %1961 = vmatpush.bf16.msra.mxu0 %v1358
    %1962 = vmatpush.bf16.msra.mxu0 %v1354
    %1963 = vmatpush.bf16.msra.mxu0 %v1350
    %1964 = vmatpush.bf16.msra.mxu0 %v1346
    %1965 = vmatpush.bf16.msra.mxu0 %v1342
    %1966 = vmatpush.bf16.msra.mxu0 %v1338
    %1967 = vmatpush.bf16.msra.mxu0 %v1334
    %1968 = vmatmul.bf16.gmra.mxu0 %v362
    %v1969 = vpop.f32.mrf.mxu0
    %v1970 = vadd.f32 %v1956, %v1969
    %v1971 = vpop.f32.mrf.mxu0
    %v1972 = vadd.f32 %v1958, %v1971
    %1973 = vdwg.mxu0
    %1974 = vmatpush.bf16.msra.mxu0 %v1394
    %1975 = vmatpush.bf16.msra.mxu0 %v1390
    %1976 = vmatpush.bf16.msra.mxu0 %v1386
    %1977 = vmatpush.bf16.msra.mxu0 %v1382
    %1978 = vmatpush.bf16.msra.mxu0 %v1378
    %1979 = vmatpush.bf16.msra.mxu0 %v1374
    %1980 = vmatpush.bf16.msra.mxu0 %v1370
    %1981 = vmatpush.bf16.msra.mxu0 %v1366
    %1982 = vmatmul.bf16.gmra.mxu0 %v363
    %v1983 = vpop.f32.mrf.mxu0
    %v1984 = vadd.f32 %v1970, %v1983
    %v1985 = vpop.f32.mrf.mxu0
    %v1986 = vadd.f32 %v1972, %v1985
    %1987 = vdwg.mxu0
    %1988 = vmatpush.bf16.msra.mxu0 %v1171
    %1989 = vmatpush.bf16.msra.mxu0 %v1167
    %1990 = vmatpush.bf16.msra.mxu0 %v1163
    %1991 = vmatpush.bf16.msra.mxu0 %v1159
    %1992 = vmatpush.bf16.msra.mxu0 %v1155
    %1993 = vmatpush.bf16.msra.mxu0 %v1151
    %1994 = vmatpush.bf16.msra.mxu0 %v1147
    %1995 = vmatpush.bf16.msra.mxu0 %v1143
    %1996 = vmatmul.bf16.gmra.mxu0 %v356
    %v1997 = vpop.f32.mrf.mxu0
    %v1998 = vadd.f32 %v327, %v1997
    %v1999 = vpop.f32.mrf.mxu0
    %v2000 = vadd.f32 %v327, %v1999
    %2001 = vdwg.mxu0
    %2002 = vmatpush.bf16.msra.mxu0 %v1203
    %2003 = vmatpush.bf16.msra.mxu0 %v1199
    %2004 = vmatpush.bf16.msra.mxu0 %v1195
    %2005 = vmatpush.bf16.msra.mxu0 %v1191
    %2006 = vmatpush.bf16.msra.mxu0 %v1187
    %2007 = vmatpush.bf16.msra.mxu0 %v1183
    %2008 = vmatpush.bf16.msra.mxu0 %v1179
    %2009 = vmatpush.bf16.msra.mxu0 %v1175
    %2010 = vmatmul.bf16.gmra.mxu0 %v357
    %v2011 = vpop.f32.mrf.mxu0
    %v2012 = vadd.f32 %v1998, %v2011
    %v2013 = vpop.f32.mrf.mxu0
    %v2014 = vadd.f32 %v2000, %v2013
    %2015 = vdwg.mxu0
    %2016 = vmatpush.bf16.msra.mxu0 %v1235
    %2017 = vmatpush.bf16.msra.mxu0 %v1231
    %2018 = vmatpush.bf16.msra.mxu0 %v1227
    %2019 = vmatpush.bf16.msra.mxu0 %v1223
    %2020 = vmatpush.bf16.msra.mxu0 %v1219
    %2021 = vmatpush.bf16.msra.mxu0 %v1215
    %2022 = vmatpush.bf16.msra.mxu0 %v1211
    %2023 = vmatpush.bf16.msra.mxu0 %v1207
    %2024 = vmatmul.bf16.gmra.mxu0 %v358
    %v2025 = vpop.f32.mrf.mxu0
    %v2026 = vadd.f32 %v2012, %v2025
    %v2027 = vpop.f32.mrf.mxu0
    %v2028 = vadd.f32 %v2014, %v2027
    %2029 = vdwg.mxu0
    %2030 = vmatpush.bf16.msra.mxu0 %v1267
    %2031 = vmatpush.bf16.msra.mxu0 %v1263
    %2032 = vmatpush.bf16.msra.mxu0 %v1259
    %2033 = vmatpush.bf16.msra.mxu0 %v1255
    %2034 = vmatpush.bf16.msra.mxu0 %v1251
    %2035 = vmatpush.bf16.msra.mxu0 %v1247
    %2036 = vmatpush.bf16.msra.mxu0 %v1243
    %2037 = vmatpush.bf16.msra.mxu0 %v1239
    %2038 = vmatmul.bf16.gmra.mxu0 %v359
    %v2039 = vpop.f32.mrf.mxu0
    %v2040 = vadd.f32 %v2026, %v2039
    %v2041 = vpop.f32.mrf.mxu0
    %v2042 = vadd.f32 %v2028, %v2041
    %2043 = vdwg.mxu0
    %2044 = vmatpush.bf16.msra.mxu0 %v1299
    %2045 = vmatpush.bf16.msra.mxu0 %v1295
    %2046 = vmatpush.bf16.msra.mxu0 %v1291
    %2047 = vmatpush.bf16.msra.mxu0 %v1287
    %2048 = vmatpush.bf16.msra.mxu0 %v1283
    %2049 = vmatpush.bf16.msra.mxu0 %v1279
    %2050 = vmatpush.bf16.msra.mxu0 %v1275
    %2051 = vmatpush.bf16.msra.mxu0 %v1271
    %2052 = vmatmul.bf16.gmra.mxu0 %v360
    %v2053 = vpop.f32.mrf.mxu0
    %v2054 = vadd.f32 %v2040, %v2053
    %v2055 = vpop.f32.mrf.mxu0
    %v2056 = vadd.f32 %v2042, %v2055
    %2057 = vdwg.mxu0
    %2058 = vmatpush.bf16.msra.mxu0 %v1331
    %2059 = vmatpush.bf16.msra.mxu0 %v1327
    %2060 = vmatpush.bf16.msra.mxu0 %v1323
    %2061 = vmatpush.bf16.msra.mxu0 %v1319
    %2062 = vmatpush.bf16.msra.mxu0 %v1315
    %2063 = vmatpush.bf16.msra.mxu0 %v1311
    %2064 = vmatpush.bf16.msra.mxu0 %v1307
    %2065 = vmatpush.bf16.msra.mxu0 %v1303
    %2066 = vmatmul.bf16.gmra.mxu0 %v361
    %v2067 = vpop.f32.mrf.mxu0
    %v2068 = vadd.f32 %v2054, %v2067
    %v2069 = vpop.f32.mrf.mxu0
    %v2070 = vadd.f32 %v2056, %v2069
    %2071 = vdwg.mxu0
    %2072 = vmatpush.bf16.msra.mxu0 %v1363
    %2073 = vmatpush.bf16.msra.mxu0 %v1359
    %2074 = vmatpush.bf16.msra.mxu0 %v1355
    %2075 = vmatpush.bf16.msra.mxu0 %v1351
    %2076 = vmatpush.bf16.msra.mxu0 %v1347
    %2077 = vmatpush.bf16.msra.mxu0 %v1343
    %2078 = vmatpush.bf16.msra.mxu0 %v1339
    %2079 = vmatpush.bf16.msra.mxu0 %v1335
    %2080 = vmatmul.bf16.gmra.mxu0 %v362
    %v2081 = vpop.f32.mrf.mxu0
    %v2082 = vadd.f32 %v2068, %v2081
    %v2083 = vpop.f32.mrf.mxu0
    %v2084 = vadd.f32 %v2070, %v2083
    %2085 = vdwg.mxu0
    %2086 = vmatpush.bf16.msra.mxu0 %v1395
    %2087 = vmatpush.bf16.msra.mxu0 %v1391
    %2088 = vmatpush.bf16.msra.mxu0 %v1387
    %2089 = vmatpush.bf16.msra.mxu0 %v1383
    %2090 = vmatpush.bf16.msra.mxu0 %v1379
    %2091 = vmatpush.bf16.msra.mxu0 %v1375
    %2092 = vmatpush.bf16.msra.mxu0 %v1371
    %2093 = vmatpush.bf16.msra.mxu0 %v1367
    %2094 = vmatmul.bf16.gmra.mxu0 %v363
    %v2095 = vpop.f32.mrf.mxu0
    %v2096 = vadd.f32 %v2082, %v2095
    %v2097 = vpop.f32.mrf.mxu0
    %v2098 = vadd.f32 %v2084, %v2097
    %2099 = vdwg.mxu0
    %v2100 = vmax.f32 %v1760, 0.0
    %v2101 = vmax.f32 %v1872, 0.0
    %v2102 = vmax.f32 %v1984, 0.0
    %v2103 = vmax.f32 %v2096, 0.0
    %v2104 = vmax.f32 %v1762, 0.0
    %v2105 = vmax.f32 %v1874, 0.0
    %v2106 = vmax.f32 %v1986, 0.0
    %v2107 = vmax.f32 %v2098, 0.0
    %v2108 = vpack.c.bf16 %v2104, %v2100
    %v2109 = vpack.c.bf16 %v2105, %v2101
    %v2110 = vpack.c.bf16 %v2106, %v2102
    %v2111 = vpack.c.bf16 %v2107, %v2103
    %v2112 = vld [vmem:[%s3] sm:$0xf]
    %v2113 = vld [vmem:[%s3 + $0x4] sm:$0xf]
    %v2114 = vld [vmem:[%s3 + $0x8] sm:$0xf]
    %v2115 = vld [vmem:[%s3 + $0xc] sm:$0xf]
    %v2116 = vld [vmem:[%s3 + $0x10] sm:$0xf]
    %v2117 = vld [vmem:[%s3 + $0x14] sm:$0xf]
    %v2118 = vld [vmem:[%s3 + $0x18] sm:$0xf]
    %v2119 = vld [vmem:[%s3 + $0x1c] sm:$0xf]
    %v2120 = vld [vmem:[%s3 + $0x20] sm:$0xf]
    %v2121 = vld [vmem:[%s3 + $0x24] sm:$0xf]
    %v2122 = vld [vmem:[%s3 + $0x28] sm:$0xf]
    %v2123 = vld [vmem:[%s3 + $0x2c] sm:$0xf]
    %v2124 = vld [vmem:[%s3 + $0x30] sm:$0xf]
    %v2125 = vld [vmem:[%s3 + $0x34] sm:$0xf]
    %v2126 = vld [vmem:[%s3 + $0x38] sm:$0xf]
    %v2127 = vld [vmem:[%s3 + $0x3c] sm:$0xf]
    %v2128 = vld [vmem:[%s3 + $0x40] sm:$0xf]
    %v2129 = vld [vmem:[%s3 + $0x44] sm:$0xf]
    %v2130 = vld [vmem:[%s3 + $0x48] sm:$0xf]
    %v2131 = vld [vmem:[%s3 + $0x4c] sm:$0xf]
    %v2132 = vld [vmem:[%s3 + $0x50] sm:$0xf]
    %v2133 = vld [vmem:[%s3 + $0x54] sm:$0xf]
    %v2134 = vld [vmem:[%s3 + $0x58] sm:$0xf]
    %v2135 = vld [vmem:[%s3 + $0x5c] sm:$0xf]
    %v2136 = vld [vmem:[%s3 + $0x60] sm:$0xf]
    %v2137 = vld [vmem:[%s3 + $0x64] sm:$0xf]
    %v2138 = vld [vmem:[%s3 + $0x68] sm:$0xf]
    %v2139 = vld [vmem:[%s3 + $0x6c] sm:$0xf]
    %v2140 = vld [vmem:[%s3 + $0x70] sm:$0xf]
    %v2141 = vld [vmem:[%s3 + $0x74] sm:$0xf]
    %v2142 = vld [vmem:[%s3 + $0x78] sm:$0xf]
    %v2143 = vld [vmem:[%s3 + $0x7c] sm:$0xf]
    %v2144 = vld [vmem:[%s3 + $0x80] sm:$0xf]
    %v2145 = vld [vmem:[%s3 + $0x84] sm:$0xf]
    %v2146 = vld [vmem:[%s3 + $0x88] sm:$0xf]
    %v2147 = vld [vmem:[%s3 + $0x8c] sm:$0xf]
    %v2148 = vld [vmem:[%s3 + $0x90] sm:$0xf]
    %v2149 = vld [vmem:[%s3 + $0x94] sm:$0xf]
    %v2150 = vld [vmem:[%s3 + $0x98] sm:$0xf]
    %v2151 = vld [vmem:[%s3 + $0x9c] sm:$0xf]
    %v2152 = vld [vmem:[%s3 + $0xa0] sm:$0xf]
    %v2153 = vld [vmem:[%s3 + $0xa4] sm:$0xf]
    %v2154 = vld [vmem:[%s3 + $0xa8] sm:$0xf]
    %v2155 = vld [vmem:[%s3 + $0xac] sm:$0xf]
    %v2156 = vld [vmem:[%s3 + $0xb0] sm:$0xf]
    %v2157 = vld [vmem:[%s3 + $0xb4] sm:$0xf]
    %v2158 = vld [vmem:[%s3 + $0xb8] sm:$0xf]
    %v2159 = vld [vmem:[%s3 + $0xbc] sm:$0xf]
    %v2160 = vld [vmem:[%s3 + $0xc0] sm:$0xf]
    %v2161 = vld [vmem:[%s3 + $0xc4] sm:$0xf]
    %v2162 = vld [vmem:[%s3 + $0xc8] sm:$0xf]
    %v2163 = vld [vmem:[%s3 + $0xcc] sm:$0xf]
    %v2164 = vld [vmem:[%s3 + $0xd0] sm:$0xf]
    %v2165 = vld [vmem:[%s3 + $0xd4] sm:$0xf]
    %v2166 = vld [vmem:[%s3 + $0xd8] sm:$0xf]
    %v2167 = vld [vmem:[%s3 + $0xdc] sm:$0xf]
    %v2168 = vld [vmem:[%s3 + $0xe0] sm:$0xf]
    %v2169 = vld [vmem:[%s3 + $0xe4] sm:$0xf]
    %v2170 = vld [vmem:[%s3 + $0xe8] sm:$0xf]
    %v2171 = vld [vmem:[%s3 + $0xec] sm:$0xf]
    %v2172 = vld [vmem:[%s3 + $0xf0] sm:$0xf]
    %v2173 = vld [vmem:[%s3 + $0xf4] sm:$0xf]
    %v2174 = vld [vmem:[%s3 + $0xf8] sm:$0xf]
    %v2175 = vld [vmem:[%s3 + $0xfc] sm:$0xf]
    %v2176 = vld [vmem:[%s4] sm:$0x1]
    %v2178 = vperm.slane %v2176, 0
    %v2244 = vunpack.c.l.b16 %v2112
    %v2245 = vunpack.c.l.b16 %v2113
    %v2246 = vunpack.c.l.b16 %v2114
    %v2247 = vunpack.c.l.b16 %v2115
    %v2248 = vunpack.c.l.b16 %v2116
    %v2249 = vunpack.c.l.b16 %v2117
    %v2250 = vunpack.c.l.b16 %v2118
    %v2251 = vunpack.c.l.b16 %v2119
    %v2252 = vunpack.c.l.b16 %v2120
    %v2253 = vunpack.c.l.b16 %v2121
    %v2254 = vunpack.c.l.b16 %v2122
    %v2255 = vunpack.c.l.b16 %v2123
    %v2256 = vunpack.c.l.b16 %v2124
    %v2257 = vunpack.c.l.b16 %v2125
    %v2258 = vunpack.c.l.b16 %v2126
    %v2259 = vunpack.c.l.b16 %v2127
    %v2260 = vunpack.c.l.b16 %v2128
    %v2261 = vunpack.c.l.b16 %v2129
    %v2262 = vunpack.c.l.b16 %v2130
    %v2263 = vunpack.c.l.b16 %v2131
    %v2264 = vunpack.c.l.b16 %v2132
    %v2265 = vunpack.c.l.b16 %v2133
    %v2266 = vunpack.c.l.b16 %v2134
    %v2267 = vunpack.c.l.b16 %v2135
    %v2268 = vunpack.c.l.b16 %v2136
    %v2269 = vunpack.c.l.b16 %v2137
    %v2270 = vunpack.c.l.b16 %v2138
    %v2271 = vunpack.c.l.b16 %v2139
    %v2272 = vunpack.c.l.b16 %v2140
    %v2273 = vunpack.c.l.b16 %v2141
    %v2274 = vunpack.c.l.b16 %v2142
    %v2275 = vunpack.c.l.b16 %v2143
    %v2276 = vunpack.c.l.b16 %v2144
    %v2277 = vunpack.c.l.b16 %v2145
    %v2278 = vunpack.c.l.b16 %v2146
    %v2279 = vunpack.c.l.b16 %v2147
    %v2280 = vunpack.c.l.b16 %v2148
    %v2281 = vunpack.c.l.b16 %v2149
    %v2282 = vunpack.c.l.b16 %v2150
    %v2283 = vunpack.c.l.b16 %v2151
    %v2284 = vunpack.c.l.b16 %v2152
    %v2285 = vunpack.c.l.b16 %v2153
    %v2286 = vunpack.c.l.b16 %v2154
    %v2287 = vunpack.c.l.b16 %v2155
    %v2288 = vunpack.c.l.b16 %v2156
    %v2289 = vunpack.c.l.b16 %v2157
    %v2290 = vunpack.c.l.b16 %v2158
    %v2291 = vunpack.c.l.b16 %v2159
    %v2292 = vunpack.c.l.b16 %v2160
    %v2293 = vunpack.c.l.b16 %v2161
    %v2294 = vunpack.c.l.b16 %v2162
    %v2295 = vunpack.c.l.b16 %v2163
    %v2296 = vunpack.c.l.b16 %v2164
    %v2297 = vunpack.c.l.b16 %v2165
    %v2298 = vunpack.c.l.b16 %v2166
    %v2299 = vunpack.c.l.b16 %v2167
    %v2300 = vunpack.c.l.b16 %v2168
    %v2301 = vunpack.c.l.b16 %v2169
    %v2302 = vunpack.c.l.b16 %v2170
    %v2303 = vunpack.c.l.b16 %v2171
    %v2304 = vunpack.c.l.b16 %v2172
    %v2305 = vunpack.c.l.b16 %v2173
    %v2306 = vunpack.c.l.b16 %v2174
    %v2307 = vunpack.c.l.b16 %v2175
    %v2308 = vpack.c.b16 %v2245, %v2244
    %v2309 = vpack.c.b16 %v2247, %v2246
    %v2310 = vpack.c.b16 %v2249, %v2248
    %v2311 = vpack.c.b16 %v2251, %v2250
    %v2312 = vpack.c.b16 %v2253, %v2252
    %v2313 = vpack.c.b16 %v2255, %v2254
    %v2314 = vpack.c.b16 %v2257, %v2256
    %v2315 = vpack.c.b16 %v2259, %v2258
    %v2316 = vpack.c.b16 %v2261, %v2260
    %v2317 = vpack.c.b16 %v2263, %v2262
    %v2318 = vpack.c.b16 %v2265, %v2264
    %v2319 = vpack.c.b16 %v2267, %v2266
    %v2320 = vpack.c.b16 %v2269, %v2268
    %v2321 = vpack.c.b16 %v2271, %v2270
    %v2322 = vpack.c.b16 %v2273, %v2272
    %v2323 = vpack.c.b16 %v2275, %v2274
    %v2324 = vpack.c.b16 %v2277, %v2276
    %v2325 = vpack.c.b16 %v2279, %v2278
    %v2326 = vpack.c.b16 %v2281, %v2280
    %v2327 = vpack.c.b16 %v2283, %v2282
    %v2328 = vpack.c.b16 %v2285, %v2284
    %v2329 = vpack.c.b16 %v2287, %v2286
    %v2330 = vpack.c.b16 %v2289, %v2288
    %v2331 = vpack.c.b16 %v2291, %v2290
    %v2332 = vpack.c.b16 %v2293, %v2292
    %v2333 = vpack.c.b16 %v2295, %v2294
    %v2334 = vpack.c.b16 %v2297, %v2296
    %v2335 = vpack.c.b16 %v2299, %v2298
    %v2336 = vpack.c.b16 %v2301, %v2300
    %v2337 = vpack.c.b16 %v2303, %v2302
    %v2338 = vpack.c.b16 %v2305, %v2304
    %v2339 = vpack.c.b16 %v2307, %v2306
    %2372 = vmatpush.bf16.msra.mxu0 %v2315
    %2373 = vmatpush.bf16.msra.mxu0 %v2314
    %2374 = vmatpush.bf16.msra.mxu0 %v2313
    %2375 = vmatpush.bf16.msra.mxu0 %v2312
    %2376 = vmatpush.bf16.msra.mxu0 %v2311
    %2377 = vmatpush.bf16.msra.mxu0 %v2310
    %2378 = vmatpush.bf16.msra.mxu0 %v2309
    %2379 = vmatpush.bf16.msra.mxu0 %v2308
    %2380 = vmatmul.bf16.gmra.mxu0 %v2108
    %v2381 = vpop.f32.mrf.mxu0
    %v2382 = vadd.f32 %v2178, %v2381
    %v2383 = vpop.f32.mrf.mxu0
    %v2384 = vadd.f32 %v2178, %v2383
    %2385 = vdwg.mxu0
    %2386 = vmatpush.bf16.msra.mxu0 %v2323
    %2387 = vmatpush.bf16.msra.mxu0 %v2322
    %2388 = vmatpush.bf16.msra.mxu0 %v2321
    %2389 = vmatpush.bf16.msra.mxu0 %v2320
    %2390 = vmatpush.bf16.msra.mxu0 %v2319
    %2391 = vmatpush.bf16.msra.mxu0 %v2318
    %2392 = vmatpush.bf16.msra.mxu0 %v2317
    %2393 = vmatpush.bf16.msra.mxu0 %v2316
    %2394 = vmatmul.bf16.gmra.mxu0 %v2109
    %v2395 = vpop.f32.mrf.mxu0
    %v2396 = vadd.f32 %v2382, %v2395
    %v2397 = vpop.f32.mrf.mxu0
    %v2398 = vadd.f32 %v2384, %v2397
    %2399 = vdwg.mxu0
    %2400 = vmatpush.bf16.msra.mxu0 %v2331
    %2401 = vmatpush.bf16.msra.mxu0 %v2330
    %2402 = vmatpush.bf16.msra.mxu0 %v2329
    %2403 = vmatpush.bf16.msra.mxu0 %v2328
    %2404 = vmatpush.bf16.msra.mxu0 %v2327
    %2405 = vmatpush.bf16.msra.mxu0 %v2326
    %2406 = vmatpush.bf16.msra.mxu0 %v2325
    %2407 = vmatpush.bf16.msra.mxu0 %v2324
    %2408 = vmatmul.bf16.gmra.mxu0 %v2110
    %v2409 = vpop.f32.mrf.mxu0
    %v2410 = vadd.f32 %v2396, %v2409
    %v2411 = vpop.f32.mrf.mxu0
    %v2412 = vadd.f32 %v2398, %v2411
    %2413 = vdwg.mxu0
    %2414 = vmatpush.bf16.msra.mxu0 %v2339
    %2415 = vmatpush.bf16.msra.mxu0 %v2338
    %2416 = vmatpush.bf16.msra.mxu0 %v2337
    %2417 = vmatpush.bf16.msra.mxu0 %v2336
    %2418 = vmatpush.bf16.msra.mxu0 %v2335
    %2419 = vmatpush.bf16.msra.mxu0 %v2334
    %2420 = vmatpush.bf16.msra.mxu0 %v2333
    %2421 = vmatpush.bf16.msra.mxu0 %v2332
    %2422 = vmatmul.bf16.gmra.mxu0 %v2111
    %v2423 = vpop.f32.mrf.mxu0
    %v2424 = vadd.f32 %v2410, %v2423
    %v2425 = vpop.f32.mrf.mxu0
    %v2426 = vadd.f32 %v2412, %v2425
    %2427 = vdwg.mxu0
    %v2428 = vmax.f32 %v2424, 0.0
    %v2429 = vmax.f32 %v2426, 0.0
    %v2430 = vpack.c.bf16 %v2429, %v2428
    %v2431 = vld [vmem:[#allocation4] sm:$0xf]
    %v2432 = vld [vmem:[#allocation4 + $0x4] sm:$0xf]
    %v2433 = vld [vmem:[#allocation4 + $0x8] sm:$0xf]
    %v2434 = vld [vmem:[#allocation4 + $0xc] sm:$0xf]
    %v2435 = vld [vmem:[#allocation4 + $0x10] sm:$0xf]
    %v2436 = vld [vmem:[#allocation4 + $0x14] sm:$0xf]
    %v2437 = vld [vmem:[#allocation4 + $0x18] sm:$0xf]
    %v2438 = vld [vmem:[#allocation4 + $0x1c] sm:$0xf]
    %v2439 = vld [vmem:[#allocation4 + $0x20] sm:$0xf]
    %v2440 = vld [vmem:[#allocation4 + $0x24] sm:$0xf]
    %v2441 = vld [vmem:[#allocation4 + $0x28] sm:$0xf]
    %v2442 = vld [vmem:[#allocation4 + $0x2c] sm:$0xf]
    %v2443 = vld [vmem:[#allocation4 + $0x30] sm:$0xf]
    %v2444 = vld [vmem:[#allocation4 + $0x34] sm:$0xf]
    %v2445 = vld [vmem:[#allocation4 + $0x38] sm:$0xf]
    %v2446 = vld [vmem:[#allocation4 + $0x3c] sm:$0xf]
    %v2447 = vld [vmem:[%s6] sm:$0x1]
    %v2449 = vperm.slane %v2447, 0
    %v2467 = vunpack.c.l.b16 %v2431
    %v2468 = vunpack.c.l.b16 %v2432
    %v2469 = vunpack.c.l.b16 %v2433
    %v2470 = vunpack.c.l.b16 %v2434
    %v2471 = vunpack.c.l.b16 %v2435
    %v2472 = vunpack.c.l.b16 %v2436
    %v2473 = vunpack.c.l.b16 %v2437
    %v2474 = vunpack.c.l.b16 %v2438
    %v2475 = vunpack.c.l.b16 %v2439
    %v2476 = vunpack.c.l.b16 %v2440
    %v2477 = vunpack.c.l.b16 %v2441
    %v2478 = vunpack.c.l.b16 %v2442
    %v2479 = vunpack.c.l.b16 %v2443
    %v2480 = vunpack.c.l.b16 %v2444
    %v2481 = vunpack.c.l.b16 %v2445
    %v2482 = vunpack.c.l.b16 %v2446
    %v2483 = vpack.c.b16 %v2468, %v2467
    %v2484 = vpack.c.b16 %v2470, %v2469
    %v2485 = vpack.c.b16 %v2472, %v2471
    %v2486 = vpack.c.b16 %v2474, %v2473
    %v2487 = vpack.c.b16 %v2476, %v2475
    %v2488 = vpack.c.b16 %v2478, %v2477
    %v2489 = vpack.c.b16 %v2480, %v2479
    %v2490 = vpack.c.b16 %v2482, %v2481
    %2499 = vmatpush.bf16.msra.mxu0 %v2490
    %2500 = vmatpush.bf16.msra.mxu0 %v2489
    %2501 = vmatpush.bf16.msra.mxu0 %v2488
    %2502 = vmatpush.bf16.msra.mxu0 %v2487
    %2503 = vmatpush.bf16.msra.mxu0 %v2486
    %2504 = vmatpush.bf16.msra.mxu0 %v2485
    %2505 = vmatpush.bf16.msra.mxu0 %v2484
    %2506 = vmatpush.bf16.msra.mxu0 %v2483
    %2507 = vmatmul.bf16.gmra.mxu0 %v2430
    %v2508 = vpop.f32.mrf.mxu0
    %v2509 = vadd.f32 %v2449, %v2508
    %v2510 = vpop.f32.mrf.mxu0
    %v2511 = vadd.f32 %v2449, %v2510
    %2512 = vdwg.mxu0
    %2513 = vst [vmem:[%s7] sm:$0xff] %v2509
    %2514 = vst [vmem:[%s7 + $0x8] sm:$0xff] %v2511
    // Predicated region
    $region38: #{nd_parameter_estimator_forward.1} parent=1 // pred_check
      _
    $region39: #{nd_parameter_estimator_forward.1} parent=1 // pred_check_branch
      %2516 = sbr.rel (0) target = $region41
    $region40: #{nd_parameter_estimator_forward.1} parent=1 // pred_region
      _
    $region41: #{nd_parameter_estimator_forward.1} parent=1 // pred_fallthru
      _
    // Predicated region
    $region42: #{nd_parameter_estimator_forward.1} parent=1 // pred_check
      _
    $region43: #{nd_parameter_estimator_forward.1} parent=1 // pred_check_branch
      %2518 = sbr.rel (0) target = $region45
    $region44: #{nd_parameter_estimator_forward.1} parent=1 // pred_region
      _
    $region45: #{nd_parameter_estimator_forward.1} parent=1 // pred_fallthru
      _
    %2519 = vsyncpa [#allocation3], 1
    %2520 = vsyncpa [#allocation5], 1

</llo_original>
